<compile_context>
chip_gen: v6e
topology: v6e:2x2x1
jax: 0.10.0
libtpu: 0.0.40
codegen_flags: <defaults>
</compile_context>

<pallas_src>
import jax
import jax.numpy as jnp
from jax.experimental import pallas as pl
from jax.experimental.pallas import tpu as pltpu

BN_EPS = 1e-5
LANE = 128           # feature dim padded to a multiple of the 128-wide lane axis
SUBLANE_BF16 = 16    # bf16 sublane packing granularity for the batch tile
MXU_M_TARGET = 256   # target batch-tile rows (fills the 256-wide MXU on v6e/v7x)


def _round_up(n, m):
    return (n + m - 1) // m * m


def _choose_batch_tile(b):
    """Batch tile as close to MXU_M_TARGET as possible (multiple of 16) while
    keeping batch-padding waste low for small or odd batch sizes."""
    nb = max(1, -(-b // MXU_M_TARGET))
    return _round_up(-(-b // nb), SUBLANE_BF16)


def _vmem_limit_bytes():
    """Generation-aware VMEM budget: ~75% of physical VMEM (≈48 MiB on v7x's
    64 MiB, ≈96 MiB on v5e/v6e's 128 MiB) so Mosaic internal scratch and the
    pipeline double buffers always fit."""
    try:
        cap = int(pltpu.get_tpu_info().vmem_capacity_bytes)
    except Exception:                      # conservative fallback, safe everywhere
        cap = 64 << 20
    return int(0.75 * cap)


# ---------------------------------------------------------------------------
# Kernels
# ---------------------------------------------------------------------------
def _make_residual_matmul_kernel(n_in):
    """One batch tile of a Residual block's Linear + BatchNorm partial stats.

        u            = sum_j slot_j @ W_j      (bf16 operands, f32 MXU accum)
        stats[tile]  = [sum_rows(u), sum_rows(u*u)]   (two-pass BN, pass 1)

    The Linear bias is intentionally omitted: training-mode BatchNorm subtracts
    the batch mean, so the bias cancels exactly, and its omission keeps
    zero-padded batch rows at exactly zero (no pollution of the statistics).
    """
    def residual_matmul_kernel(*refs):
        slots = refs[:n_in]
        weights = refs[n_in:2 * n_in]
        u_ref, stats_ref = refs[2 * n_in], refs[2 * n_in + 1]

        u = jnp.dot(slots[0][...], weights[0][...],
                    preferred_element_type=jnp.float32)
        for j in range(1, n_in):
            u = u + jnp.dot(slots[j][...], weights[j][...],
                            preferred_element_type=jnp.float32)
        u_ref[...] = u

        # Both reductions are taken from the same freshly computed tile of u.
        ssum = jnp.sum(u, axis=0, keepdims=True)        # (1, Dp)
        ssq = jnp.sum(u * u, axis=0, keepdims=True)     # (1, Dp)
        stats_ref[...] = jnp.concatenate([ssum, ssq], axis=0)[None]   # (1, 2, Dp)

    return residual_matmul_kernel


def _make_final_matmul_kernel(n_in):
    """One batch tile of the final Linear(5D -> D): bias included, no BN."""
    def final_matmul_kernel(*refs):
        slots = refs[:n_in]
        weights = refs[n_in:2 * n_in]
        b_ref, out_ref = refs[2 * n_in], refs[2 * n_in + 1]

        acc = jnp.dot(slots[0][...], weights[0][...],
                      preferred_element_type=jnp.float32)
        for j in range(1, n_in):
            acc = acc + jnp.dot(slots[j][...], weights[j][...],
                                preferred_element_type=jnp.float32)
        out_ref[...] = acc + b_ref[...]

    return final_matmul_kernel


# ---------------------------------------------------------------------------
# pallas_call builders (batch-gridded, resident weights)
# ---------------------------------------------------------------------------
def _residual_call(slots, wblocks, tb, nb, dp, vmem_limit):
    n_in = len(slots)
    bp = slots[0].shape[0]
    slot_spec = pl.BlockSpec((tb, dp), lambda i: (i, 0))       # pipelined per tile
    w_spec = pl.BlockSpec((dp, dp), lambda i: (0, 0))          # resident weights
    flops = 2 * bp * n_in * dp * dp
    bytes_accessed = (n_in * (bp * dp * 2 + dp * dp * 2)       # bf16 slots + weights
                      + bp * dp * 4 + nb * 2 * dp * 4)         # f32 preact + stats
    return pl.pallas_call(
        _make_residual_matmul_kernel(n_in),
        grid=(nb,),
        in_specs=[slot_spec] * n_in + [w_spec] * n_in,
        out_specs=(pl.BlockSpec((tb, dp), lambda i: (i, 0)),
                   pl.BlockSpec((1, 2, dp), lambda i: (i, 0, 0))),
        out_shape=(jax.ShapeDtypeStruct((bp, dp), jnp.float32),
                   jax.ShapeDtypeStruct((nb, 2, dp), jnp.float32)),
        compiler_params=pltpu.CompilerParams(
            dimension_semantics=("parallel",),                  # per-tile stats ->
            vmem_limit_bytes=vmem_limit),                       # megacore-safe
        cost_estimate=pl.CostEstimate(flops=flops, transcendentals=0,
                                      bytes_accessed=bytes_accessed),
    )(*slots, *wblocks)


def _final_call(slots, wblocks, bias, tb, nb, dp, vmem_limit):
    n_in = len(slots)
    bp = slots[0].shape[0]
    slot_spec = pl.BlockSpec((tb, dp), lambda i: (i, 0))
    w_spec = pl.BlockSpec((dp, dp), lambda i: (0, 0))
    b_spec = pl.BlockSpec((1, dp), lambda i: (0, 0))
    flops = 2 * bp * n_in * dp * dp
    bytes_accessed = n_in * (bp * dp * 2 + dp * dp * 2) + dp * 4 + bp * dp * 4
    return pl.pallas_call(
        _make_final_matmul_kernel(n_in),
        grid=(nb,),
        in_specs=[slot_spec] * n_in + [w_spec] * n_in + [b_spec],
        out_specs=pl.BlockSpec((tb, dp), lambda i: (i, 0)),
        out_shape=jax.ShapeDtypeStruct((bp, dp), jnp.float32),
        compiler_params=pltpu.CompilerParams(
            dimension_semantics=("parallel",),
            vmem_limit_bytes=vmem_limit),
        cost_estimate=pl.CostEstimate(flops=flops, transcendentals=0,
                                      bytes_accessed=bytes_accessed),
    )(*slots, *wblocks, bias)


# ---------------------------------------------------------------------------
# Host-side weight re-layout (split into per-slot Dp x Dp bf16 blocks)
# ---------------------------------------------------------------------------
def _split_weight(w, layer_idx, d, dp):
    """Canonical torch input order for layer l is [o_{l-1}, ..., o_1, rc, mask];
    return its D-row blocks zero-padded to (Dp, Dp) bf16, reordered to the
    kernel slot order [rc, mask, o_1, ..., o_{l-1}]."""
    order = [layer_idx - 1, layer_idx] + list(range(layer_idx - 2, -1, -1))
    return [jnp.pad(w[c * d:(c + 1) * d, :],
                    ((0, dp - d), (0, dp - d))).astype(jnp.bfloat16)
            for c in order]


# ---------------------------------------------------------------------------
# Wrapper
# ---------------------------------------------------------------------------
@jax.jit
def generator_forward(x, mask, z, params):
    (w1, b1, g1, be1, w2, b2, g2, be2, w3, b3, g3, be3, w4, b4) = params
    del b1, b2, b3   # residual Linear biases cancel exactly under training-mode BN

    B, D = x.shape
    Dp = _round_up(D, LANE)
    # TODO(synk): for data_dim << 128 the per-slot padding to Dp=128 dominates
    # weight DMA and MXU work; pack the slots densely (sublane-granular K) then.
    TB = _choose_batch_tile(B)
    Bp = _round_up(B, TB)
    NB = Bp // TB
    vmem_limit = _vmem_limit_bytes()
    inv_b = jnp.float32(1.0 / B)

    # ---- elementwise prologue in XLA (exact for arbitrary, not only 0/1, masks)
    data_norm = jnp.where(mask == 0.0, 0.0, x)
    rc = mask * data_norm + (1.0 - mask) * z            # random_combined

    def pad_tile(a):                                    # (B, D) -> (Bp, Dp)
        return jnp.pad(a, ((0, Bp - B), (0, Dp - D)))

    def pad_vec(v):                                     # (1, D) -> (1, Dp)
        return jnp.pad(v, ((0, 0), (0, Dp - D)))        # gamma/beta padding is 0

    row_valid = (jnp.arange(Bp) < B)[:, None]           # (Bp, 1) true-batch rows

    # Activation "slots", each (Bp, Dp) bf16: [rc, mask, o1, o2, o3].
    slots = [pad_tile(rc).astype(jnp.bfloat16),
             pad_tile(mask).astype(jnp.bfloat16)]

    for w, g, be, layer in ((w1, g1, be1, 1), (w2, g2, be2, 2), (w3, g3, be3, 3)):
        wblocks = _split_weight(w, layer, D, Dp)
        u, stats = _residual_call(slots, wblocks, TB, NB, Dp, vmem_limit)

        # ---- two-pass BatchNorm finalize + apply (tiny / elementwise, in XLA) --
        tot = jnp.sum(stats, axis=0)                    # reduce over batch tiles
        mean = tot[0:1] * inv_b                         # multiply by 1/B
        var = jnp.maximum(tot[1:2] * inv_b - mean * mean, 0.0)  # clamp cancellation
        scale = pad_vec(g) * jax.lax.rsqrt(var + BN_EPS)
        shift = pad_vec(be) - mean * scale
        o_n = jnp.maximum(u * scale + shift, 0.0)       # BN + ReLU
        o_n = jnp.where(row_valid, o_n, 0.0)            # keep padded rows at zero
        slots.append(o_n.astype(jnp.bfloat16))
        # TODO(synk): fuse this scale/shift+ReLU into the next block's kernel to
        # save one (Bp, Dp) HBM round-trip per residual block.

    sample_p = _final_call(slots, _split_weight(w4, 4, D, Dp), pad_vec(b4),
                           TB, NB, Dp, vmem_limit)

    sample = sample_p[:B, :D]
    x_hat = rc * mask + sample * (1.0 - mask)
    return sample, rc, x_hat


# ---------------------------------------------------------------------------
# Parameters (canonical PyTorch layout) + pure-JAX reference
# ---------------------------------------------------------------------------
def init_params(key, data_dim):
    """Synthetic params matching the module: Linear weights stored [in, out]
    with xavier-normal init, zero bias; BN gamma=1, beta=0 (PyTorch defaults)."""
    d = data_dim
    dims_in = [2 * d, 3 * d, 4 * d, 5 * d]
    params = []
    keys = jax.random.split(key, 4)
    for li, fan_in in enumerate(dims_in):
        std = (2.0 / (fan_in + d)) ** 0.5
        params.append(std * jax.random.normal(keys[li], (fan_in, d), jnp.float32))
        params.append(jnp.zeros((1, d), jnp.float32))
        if li < 3:
            params.append(jnp.ones((1, d), jnp.float32))    # gamma
            params.append(jnp.zeros((1, d), jnp.float32))   # beta
    return tuple(params)


def reference_forward(x, mask, z, params, matmul_dtype=jnp.bfloat16):
    """Pure-JAX reference mirroring the PyTorch forward (canonical concat
    order); dot operands cast to `matmul_dtype` to match the kernel numerics."""
    (w1, b1, g1, be1, w2, b2, g2, be2, w3, b3, g3, be3, w4, b4) = params

    def dot(h, w):
        return jnp.dot(h.astype(matmul_dtype), w.astype(matmul_dtype),
                       preferred_element_type=jnp.float32)

    data_norm = jnp.where(mask == 0.0, 0.0, x)
    rc = mask * data_norm + (1.0 - mask) * z
    h = jnp.concatenate([rc, mask], axis=1)

    def res(h, w, b, g, be):
        o = dot(h, w) + b
        mu = o.mean(axis=0, keepdims=True)
        var = ((o - mu) ** 2).mean(axis=0, keepdims=True)
        o = (o - mu) / jnp.sqrt(var + BN_EPS) * g + be
        o = jnp.maximum(o, 0.0)
        return jnp.concatenate([o, h], axis=1)

    h = res(h, w1, b1, g1, be1)
    h = res(h, w2, b2, g2, be2)
    h = res(h, w3, b3, g3, be3)
    sample = dot(h, w4) + b4
    x_hat = rc * mask + sample * (1.0 - mask)
    return sample, rc, x_hat


if __name__ == "__main__":
    B, D = 8, 16  # batch, data_dim (embedding/generator dims unused in forward)
    key = jax.random.PRNGKey(0)
    k_x, k_m, k_z, k_p = jax.random.split(key, 4)

    x = jax.random.normal(k_x, (B, D), dtype=jnp.float32)
    mask = jax.random.bernoulli(k_m, 0.5, (B, D)).astype(jnp.float32)
    # z ~ Uniform(0, 0.01): randomness sourced host-side (module samples it
    # internally with torch.distributions.Uniform).
    z = jax.random.uniform(k_z, (B, D), dtype=jnp.float32) * 0.01

    params = init_params(k_p, D)

    sample, rc, x_hat = generator_forward(x, mask, z, params)
    jax.block_until_ready((sample, rc, x_hat))

    s_ref, rc_ref, xh_ref = reference_forward(x, mask, z, params)
    assert sample.shape == (B, D) and rc.shape == (B, D) and x_hat.shape == (B, D)
    assert jnp.allclose(rc, rc_ref, atol=1e-6, rtol=0.0)
    assert jnp.allclose(sample, s_ref, atol=2e-2, rtol=2e-2)
    assert jnp.allclose(x_hat, xh_ref, atol=2e-2, rtol=2e-2)

    print("KERNEL_OK")
</pallas_src>

<mosaic_0001>
module attributes {stable_mosaic.version = 11 : i64} {
  func.func @residual_matmul_kernel(%arg0: i32, %arg1: memref<16x128xbf16, #tpu.memory_space<vmem>>, %arg2: memref<16x128xbf16, #tpu.memory_space<vmem>>, %arg3: memref<128x128xbf16, #tpu.memory_space<vmem>>, %arg4: memref<128x128xbf16, #tpu.memory_space<vmem>>, %arg5: memref<16x128xf32, #tpu.memory_space<vmem>>, %arg6: memref<1x2x128xf32, #tpu.memory_space<vmem>>) attributes {dimension_semantics = [#tpu.dimension_semantics<parallel>], iteration_bounds = array<i64: 1>, scalar_prefetch = 0 : i64, scratch_operands = 0 : i64, tpu.core_type = #tpu.core_type<tc>, window_params = [{transform_indices = @transform_0, window_bounds = array<i64: 16, 128>}, {transform_indices = @transform_1, window_bounds = array<i64: 16, 128>}, {pipeline_mode = #tpu.pipeline_mode<synchronous>, transform_indices = @transform_2, window_bounds = array<i64: 128, 128>}, {pipeline_mode = #tpu.pipeline_mode<synchronous>, transform_indices = @transform_3, window_bounds = array<i64: 128, 128>}, {transform_indices = @transform_4, window_bounds = array<i64: 16, 128>}, {transform_indices = @transform_5, window_bounds = array<i64: 1, 2, 128>}]} {
    %c0 = arith.constant 0 : index
    %c0_0 = arith.constant 0 : index
    %0 = vector.load %arg1[%c0, %c0_0] : memref<16x128xbf16, #tpu.memory_space<vmem>>, vector<16x128xbf16>
    %c0_1 = arith.constant 0 : index
    %c0_2 = arith.constant 0 : index
    %1 = vector.load %arg3[%c0_1, %c0_2] : memref<128x128xbf16, #tpu.memory_space<vmem>>, vector<128x128xbf16>
    %cst = arith.constant dense<0.000000e+00> : vector<16x128xf32>
    %2 = tpu.matmul %0, %1, %cst {dimension_numbers = #tpu.dot_dimension_numbers<[1], [0], [0], [1], [0, 0, 1, 1], [], []>} : vector<16x128xbf16>, vector<128x128xbf16>, vector<16x128xf32> -> vector<16x128xf32>
    %c0_3 = arith.constant 0 : index
    %c0_4 = arith.constant 0 : index
    %3 = vector.load %arg2[%c0_3, %c0_4] : memref<16x128xbf16, #tpu.memory_space<vmem>>, vector<16x128xbf16>
    %c0_5 = arith.constant 0 : index
    %c0_6 = arith.constant 0 : index
    %4 = vector.load %arg4[%c0_5, %c0_6] : memref<128x128xbf16, #tpu.memory_space<vmem>>, vector<128x128xbf16>
    %cst_7 = arith.constant dense<0.000000e+00> : vector<16x128xf32>
    %5 = tpu.matmul %3, %4, %cst_7 {dimension_numbers = #tpu.dot_dimension_numbers<[1], [0], [0], [1], [0, 0, 1, 1], [], []>} : vector<16x128xbf16>, vector<128x128xbf16>, vector<16x128xf32> -> vector<16x128xf32>
    %6 = arith.addf %2, %5 : vector<16x128xf32>
    %c0_8 = arith.constant 0 : index
    %c0_9 = arith.constant 0 : index
    %7 = vector.load %arg5[%c0_8, %c0_9] : memref<16x128xf32, #tpu.memory_space<vmem>>, vector<16x128xf32>
    tpu.vector_store %arg5[%c0_8, %c0_9], %6 {strides = array<i32>} : memref<16x128xf32, #tpu.memory_space<vmem>>, vector<16x128xf32>,
    %cst_10 = arith.constant dense<0.000000e+00> : vector<128xf32>
    %8 = vector.multi_reduction <add>, %6, %cst_10 [0] : vector<16x128xf32> to vector<128xf32>
    %9 = vector.shape_cast %8 : vector<128xf32> to vector<1x128xf32>
    %10 = arith.mulf %6, %6 : vector<16x128xf32>
    %cst_11 = arith.constant dense<0.000000e+00> : vector<128xf32>
    %11 = vector.multi_reduction <add>, %10, %cst_11 [0] : vector<16x128xf32> to vector<128xf32>
    %12 = vector.shape_cast %11 : vector<128xf32> to vector<1x128xf32>
    %13 = tpu.concatenate %9, %12 in 0 : vector<1x128xf32>, vector<1x128xf32> -> vector<2x128xf32>
    %14 = vector.shape_cast %13 : vector<2x128xf32> to vector<1x2x128xf32>
    %c0_12 = arith.constant 0 : index
    %c0_13 = arith.constant 0 : index
    %c0_14 = arith.constant 0 : index
    %15 = vector.load %arg6[%c0_12, %c0_13, %c0_14] : memref<1x2x128xf32, #tpu.memory_space<vmem>>, vector<1x2x128xf32>
    tpu.vector_store %arg6[%c0_12, %c0_13, %c0_14], %14 {strides = array<i32>} : memref<1x2x128xf32, #tpu.memory_space<vmem>>, vector<1x2x128xf32>,
    return
  }
  func.func @transform_0(%arg0: i32) -> (i32, i32) {
    %c0_i32 = arith.constant 0 : i32
    %c0_i32_0 = arith.constant 0 : i32
    return %arg0, %c0_i32 : i32, i32
  }
  func.func @transform_1(%arg0: i32) -> (i32, i32) {
    %c0_i32 = arith.constant 0 : i32
    %c0_i32_0 = arith.constant 0 : i32
    return %arg0, %c0_i32 : i32, i32
  }
  func.func @transform_2(%arg0: i32) -> (i32, i32) {
    %c0_i32 = arith.constant 0 : i32
    %c0_i32_0 = arith.constant 0 : i32
    %c0_i32_1 = arith.constant 0 : i32
    return %c0_i32, %c0_i32_0 : i32, i32
  }
  func.func @transform_3(%arg0: i32) -> (i32, i32) {
    %c0_i32 = arith.constant 0 : i32
    %c0_i32_0 = arith.constant 0 : i32
    %c0_i32_1 = arith.constant 0 : i32
    return %c0_i32, %c0_i32_0 : i32, i32
  }
  func.func @transform_4(%arg0: i32) -> (i32, i32) {
    %c0_i32 = arith.constant 0 : i32
    %c0_i32_0 = arith.constant 0 : i32
    return %arg0, %c0_i32 : i32, i32
  }
  func.func @transform_5(%arg0: i32) -> (i32, i32, i32) {
    %c0_i32 = arith.constant 0 : i32
    %c0_i32_0 = arith.constant 0 : i32
    %c0_i32_1 = arith.constant 0 : i32
    return %arg0, %c0_i32, %c0_i32_0 : i32, i32, i32
  }
}

module attributes {stable_mosaic.version = 11 : i64} {
  func.func @residual_matmul_kernel(%arg0: i32, %arg1: memref<16x128xbf16, #tpu.memory_space<vmem>>, %arg2: memref<16x128xbf16, #tpu.memory_space<vmem>>, %arg3: memref<16x128xbf16, #tpu.memory_space<vmem>>, %arg4: memref<128x128xbf16, #tpu.memory_space<vmem>>, %arg5: memref<128x128xbf16, #tpu.memory_space<vmem>>, %arg6: memref<128x128xbf16, #tpu.memory_space<vmem>>, %arg7: memref<16x128xf32, #tpu.memory_space<vmem>>, %arg8: memref<1x2x128xf32, #tpu.memory_space<vmem>>) attributes {dimension_semantics = [#tpu.dimension_semantics<parallel>], iteration_bounds = array<i64: 1>, scalar_prefetch = 0 : i64, scratch_operands = 0 : i64, tpu.core_type = #tpu.core_type<tc>, window_params = [{transform_indices = @transform_0, window_bounds = array<i64: 16, 128>}, {transform_indices = @transform_1, window_bounds = array<i64: 16, 128>}, {transform_indices = @transform_2, window_bounds = array<i64: 16, 128>}, {pipeline_mode = #tpu.pipeline_mode<synchronous>, transform_indices = @transform_3, window_bounds = array<i64: 128, 128>}, {pipeline_mode = #tpu.pipeline_mode<synchronous>, transform_indices = @transform_4, window_bounds = array<i64: 128, 128>}, {pipeline_mode = #tpu.pipeline_mode<synchronous>, transform_indices = @transform_5, window_bounds = array<i64: 128, 128>}, {transform_indices = @transform_6, window_bounds = array<i64: 16, 128>}, {transform_indices = @transform_7, window_bounds = array<i64: 1, 2, 128>}]} {
    %c0 = arith.constant 0 : index
    %c0_0 = arith.constant 0 : index
    %0 = vector.load %arg1[%c0, %c0_0] : memref<16x128xbf16, #tpu.memory_space<vmem>>, vector<16x128xbf16>
    %c0_1 = arith.constant 0 : index
    %c0_2 = arith.constant 0 : index
    %1 = vector.load %arg4[%c0_1, %c0_2] : memref<128x128xbf16, #tpu.memory_space<vmem>>, vector<128x128xbf16>
    %cst = arith.constant dense<0.000000e+00> : vector<16x128xf32>
    %2 = tpu.matmul %0, %1, %cst {dimension_numbers = #tpu.dot_dimension_numbers<[1], [0], [0], [1], [0, 0, 1, 1], [], []>} : vector<16x128xbf16>, vector<128x128xbf16>, vector<16x128xf32> -> vector<16x128xf32>
    %c0_3 = arith.constant 0 : index
    %c0_4 = arith.constant 0 : index
    %3 = vector.load %arg2[%c0_3, %c0_4] : memref<16x128xbf16, #tpu.memory_space<vmem>>, vector<16x128xbf16>
    %c0_5 = arith.constant 0 : index
    %c0_6 = arith.constant 0 : index
    %4 = vector.load %arg5[%c0_5, %c0_6] : memref<128x128xbf16, #tpu.memory_space<vmem>>, vector<128x128xbf16>
    %cst_7 = arith.constant dense<0.000000e+00> : vector<16x128xf32>
    %5 = tpu.matmul %3, %4, %cst_7 {dimension_numbers = #tpu.dot_dimension_numbers<[1], [0], [0], [1], [0, 0, 1, 1], [], []>} : vector<16x128xbf16>, vector<128x128xbf16>, vector<16x128xf32> -> vector<16x128xf32>
    %6 = arith.addf %2, %5 : vector<16x128xf32>
    %c0_8 = arith.constant 0 : index
    %c0_9 = arith.constant 0 : index
    %7 = vector.load %arg3[%c0_8, %c0_9] : memref<16x128xbf16, #tpu.memory_space<vmem>>, vector<16x128xbf16>
    %c0_10 = arith.constant 0 : index
    %c0_11 = arith.constant 0 : index
    %8 = vector.load %arg6[%c0_10, %c0_11] : memref<128x128xbf16, #tpu.memory_space<vmem>>, vector<128x128xbf16>
    %cst_12 = arith.constant dense<0.000000e+00> : vector<16x128xf32>
    %9 = tpu.matmul %7, %8, %cst_12 {dimension_numbers = #tpu.dot_dimension_numbers<[1], [0], [0], [1], [0, 0, 1, 1], [], []>} : vector<16x128xbf16>, vector<128x128xbf16>, vector<16x128xf32> -> vector<16x128xf32>
    %10 = arith.addf %6, %9 : vector<16x128xf32>
    %c0_13 = arith.constant 0 : index
    %c0_14 = arith.constant 0 : index
    %11 = vector.load %arg7[%c0_13, %c0_14] : memref<16x128xf32, #tpu.memory_space<vmem>>, vector<16x128xf32>
    tpu.vector_store %arg7[%c0_13, %c0_14], %10 {strides = array<i32>} : memref<16x128xf32, #tpu.memory_space<vmem>>, vector<16x128xf32>,
    %cst_15 = arith.constant dense<0.000000e+00> : vector<128xf32>
    %12 = vector.multi_reduction <add>, %10, %cst_15 [0] : vector<16x128xf32> to vector<128xf32>
    %13 = vector.shape_cast %12 : vector<128xf32> to vector<1x128xf32>
    %14 = arith.mulf %10, %10 : vector<16x128xf32>
    %cst_16 = arith.constant dense<0.000000e+00> : vector<128xf32>
    %15 = vector.multi_reduction <add>, %14, %cst_16 [0] : vector<16x128xf32> to vector<128xf32>
    %16 = vector.shape_cast %15 : vector<128xf32> to vector<1x128xf32>
    %17 = tpu.concatenate %13, %16 in 0 : vector<1x128xf32>, vector<1x128xf32> -> vector<2x128xf32>
    %18 = vector.shape_cast %17 : vector<2x128xf32> to vector<1x2x128xf32>
    %c0_17 = arith.constant 0 : index
    %c0_18 = arith.constant 0 : index
    %c0_19 = arith.constant 0 : index
    %19 = vector.load %arg8[%c0_17, %c0_18, %c0_19] : memref<1x2x128xf32, #tpu.memory_space<vmem>>, vector<1x2x128xf32>
    tpu.vector_store %arg8[%c0_17, %c0_18, %c0_19], %18 {strides = array<i32>} : memref<1x2x128xf32, #tpu.memory_space<vmem>>, vector<1x2x128xf32>,
    return
  }
  func.func @transform_0(%arg0: i32) -> (i32, i32) {
    %c0_i32 = arith.constant 0 : i32
    %c0_i32_0 = arith.constant 0 : i32
    return %arg0, %c0_i32 : i32, i32
  }
  func.func @transform_1(%arg0: i32) -> (i32, i32) {
    %c0_i32 = arith.constant 0 : i32
    %c0_i32_0 = arith.constant 0 : i32
    return %arg0, %c0_i32 : i32, i32
  }
  func.func @transform_2(%arg0: i32) -> (i32, i32) {
    %c0_i32 = arith.constant 0 : i32
    %c0_i32_0 = arith.constant 0 : i32
    return %arg0, %c0_i32 : i32, i32
  }
  func.func @transform_3(%arg0: i32) -> (i32, i32) {
    %c0_i32 = arith.constant 0 : i32
    %c0_i32_0 = arith.constant 0 : i32
    %c0_i32_1 = arith.constant 0 : i32
    return %c0_i32, %c0_i32_0 : i32, i32
  }
  func.func @transform_4(%arg0: i32) -> (i32, i32) {
    %c0_i32 = arith.constant 0 : i32
    %c0_i32_0 = arith.constant 0 : i32
    %c0_i32_1 = arith.constant 0 : i32
    return %c0_i32, %c0_i32_0 : i32, i32
  }
  func.func @transform_5(%arg0: i32) -> (i32, i32) {
    %c0_i32 = arith.constant 0 : i32
    %c0_i32_0 = arith.constant 0 : i32
    %c0_i32_1 = arith.constant 0 : i32
    return %c0_i32, %c0_i32_0 : i32, i32
  }
  func.func @transform_6(%arg0: i32) -> (i32, i32) {
    %c0_i32 = arith.constant 0 : i32
    %c0_i32_0 = arith.constant 0 : i32
    return %arg0, %c0_i32 : i32, i32
  }
  func.func @transform_7(%arg0: i32) -> (i32, i32, i32) {
    %c0_i32 = arith.constant 0 : i32
    %c0_i32_0 = arith.constant 0 : i32
    %c0_i32_1 = arith.constant 0 : i32
    return %arg0, %c0_i32, %c0_i32_0 : i32, i32, i32
  }
}

module attributes {stable_mosaic.version = 11 : i64} {
  func.func @residual_matmul_kernel(%arg0: i32, %arg1: memref<16x128xbf16, #tpu.memory_space<vmem>>, %arg2: memref<16x128xbf16, #tpu.memory_space<vmem>>, %arg3: memref<16x128xbf16, #tpu.memory_space<vmem>>, %arg4: memref<16x128xbf16, #tpu.memory_space<vmem>>, %arg5: memref<128x128xbf16, #tpu.memory_space<vmem>>, %arg6: memref<128x128xbf16, #tpu.memory_space<vmem>>, %arg7: memref<128x128xbf16, #tpu.memory_space<vmem>>, %arg8: memref<128x128xbf16, #tpu.memory_space<vmem>>, %arg9: memref<16x128xf32, #tpu.memory_space<vmem>>, %arg10: memref<1x2x128xf32, #tpu.memory_space<vmem>>) attributes {dimension_semantics = [#tpu.dimension_semantics<parallel>], iteration_bounds = array<i64: 1>, scalar_prefetch = 0 : i64, scratch_operands = 0 : i64, tpu.core_type = #tpu.core_type<tc>, window_params = [{transform_indices = @transform_0, window_bounds = array<i64: 16, 128>}, {transform_indices = @transform_1, window_bounds = array<i64: 16, 128>}, {transform_indices = @transform_2, window_bounds = array<i64: 16, 128>}, {transform_indices = @transform_3, window_bounds = array<i64: 16, 128>}, {pipeline_mode = #tpu.pipeline_mode<synchronous>, transform_indices = @transform_4, window_bounds = array<i64: 128, 128>}, {pipeline_mode = #tpu.pipeline_mode<synchronous>, transform_indices = @transform_5, window_bounds = array<i64: 128, 128>}, {pipeline_mode = #tpu.pipeline_mode<synchronous>, transform_indices = @transform_6, window_bounds = array<i64: 128, 128>}, {pipeline_mode = #tpu.pipeline_mode<synchronous>, transform_indices = @transform_7, window_bounds = array<i64: 128, 128>}, {transform_indices = @transform_8, window_bounds = array<i64: 16, 128>}, {transform_indices = @transform_9, window_bounds = array<i64: 1, 2, 128>}]} {
    %c0 = arith.constant 0 : index
    %c0_0 = arith.constant 0 : index
    %0 = vector.load %arg1[%c0, %c0_0] : memref<16x128xbf16, #tpu.memory_space<vmem>>, vector<16x128xbf16>
    %c0_1 = arith.constant 0 : index
    %c0_2 = arith.constant 0 : index
    %1 = vector.load %arg5[%c0_1, %c0_2] : memref<128x128xbf16, #tpu.memory_space<vmem>>, vector<128x128xbf16>
    %cst = arith.constant dense<0.000000e+00> : vector<16x128xf32>
    %2 = tpu.matmul %0, %1, %cst {dimension_numbers = #tpu.dot_dimension_numbers<[1], [0], [0], [1], [0, 0, 1, 1], [], []>} : vector<16x128xbf16>, vector<128x128xbf16>, vector<16x128xf32> -> vector<16x128xf32>
    %c0_3 = arith.constant 0 : index
    %c0_4 = arith.constant 0 : index
    %3 = vector.load %arg2[%c0_3, %c0_4] : memref<16x128xbf16, #tpu.memory_space<vmem>>, vector<16x128xbf16>
    %c0_5 = arith.constant 0 : index
    %c0_6 = arith.constant 0 : index
    %4 = vector.load %arg6[%c0_5, %c0_6] : memref<128x128xbf16, #tpu.memory_space<vmem>>, vector<128x128xbf16>
    %cst_7 = arith.constant dense<0.000000e+00> : vector<16x128xf32>
    %5 = tpu.matmul %3, %4, %cst_7 {dimension_numbers = #tpu.dot_dimension_numbers<[1], [0], [0], [1], [0, 0, 1, 1], [], []>} : vector<16x128xbf16>, vector<128x128xbf16>, vector<16x128xf32> -> vector<16x128xf32>
    %6 = arith.addf %2, %5 : vector<16x128xf32>
    %c0_8 = arith.constant 0 : index
    %c0_9 = arith.constant 0 : index
    %7 = vector.load %arg3[%c0_8, %c0_9] : memref<16x128xbf16, #tpu.memory_space<vmem>>, vector<16x128xbf16>
    %c0_10 = arith.constant 0 : index
    %c0_11 = arith.constant 0 : index
    %8 = vector.load %arg7[%c0_10, %c0_11] : memref<128x128xbf16, #tpu.memory_space<vmem>>, vector<128x128xbf16>
    %cst_12 = arith.constant dense<0.000000e+00> : vector<16x128xf32>
    %9 = tpu.matmul %7, %8, %cst_12 {dimension_numbers = #tpu.dot_dimension_numbers<[1], [0], [0], [1], [0, 0, 1, 1], [], []>} : vector<16x128xbf16>, vector<128x128xbf16>, vector<16x128xf32> -> vector<16x128xf32>
    %10 = arith.addf %6, %9 : vector<16x128xf32>
    %c0_13 = arith.constant 0 : index
    %c0_14 = arith.constant 0 : index
    %11 = vector.load %arg4[%c0_13, %c0_14] : memref<16x128xbf16, #tpu.memory_space<vmem>>, vector<16x128xbf16>
    %c0_15 = arith.constant 0 : index
    %c0_16 = arith.constant 0 : index
    %12 = vector.load %arg8[%c0_15, %c0_16] : memref<128x128xbf16, #tpu.memory_space<vmem>>, vector<128x128xbf16>
    %cst_17 = arith.constant dense<0.000000e+00> : vector<16x128xf32>
    %13 = tpu.matmul %11, %12, %cst_17 {dimension_numbers = #tpu.dot_dimension_numbers<[1], [0], [0], [1], [0, 0, 1, 1], [], []>} : vector<16x128xbf16>, vector<128x128xbf16>, vector<16x128xf32> -> vector<16x128xf32>
    %14 = arith.addf %10, %13 : vector<16x128xf32>
    %c0_18 = arith.constant 0 : index
    %c0_19 = arith.constant 0 : index
    %15 = vector.load %arg9[%c0_18, %c0_19] : memref<16x128xf32, #tpu.memory_space<vmem>>, vector<16x128xf32>
    tpu.vector_store %arg9[%c0_18, %c0_19], %14 {strides = array<i32>} : memref<16x128xf32, #tpu.memory_space<vmem>>, vector<16x128xf32>,
    %cst_20 = arith.constant dense<0.000000e+00> : vector<128xf32>
    %16 = vector.multi_reduction <add>, %14, %cst_20 [0] : vector<16x128xf32> to vector<128xf32>
    %17 = vector.shape_cast %16 : vector<128xf32> to vector<1x128xf32>
    %18 = arith.mulf %14, %14 : vector<16x128xf32>
    %cst_21 = arith.constant dense<0.000000e+00> : vector<128xf32>
    %19 = vector.multi_reduction <add>, %18, %cst_21 [0] : vector<16x128xf32> to vector<128xf32>
    %20 = vector.shape_cast %19 : vector<128xf32> to vector<1x128xf32>
    %21 = tpu.concatenate %17, %20 in 0 : vector<1x128xf32>, vector<1x128xf32> -> vector<2x128xf32>
    %22 = vector.shape_cast %21 : vector<2x128xf32> to vector<1x2x128xf32>
    %c0_22 = arith.constant 0 : index
    %c0_23 = arith.constant 0 : index
    %c0_24 = arith.constant 0 : index
    %23 = vector.load %arg10[%c0_22, %c0_23, %c0_24] : memref<1x2x128xf32, #tpu.memory_space<vmem>>, vector<1x2x128xf32>
    tpu.vector_store %arg10[%c0_22, %c0_23, %c0_24], %22 {strides = array<i32>} : memref<1x2x128xf32, #tpu.memory_space<vmem>>, vector<1x2x128xf32>,
    return
  }
  func.func @transform_0(%arg0: i32) -> (i32, i32) {
    %c0_i32 = arith.constant 0 : i32
    %c0_i32_0 = arith.constant 0 : i32
    return %arg0, %c0_i32 : i32, i32
  }
  func.func @transform_1(%arg0: i32) -> (i32, i32) {
    %c0_i32 = arith.constant 0 : i32
    %c0_i32_0 = arith.constant 0 : i32
    return %arg0, %c0_i32 : i32, i32
  }
  func.func @transform_2(%arg0: i32) -> (i32, i32) {
    %c0_i32 = arith.constant 0 : i32
    %c0_i32_0 = arith.constant 0 : i32
    return %arg0, %c0_i32 : i32, i32
  }
  func.func @transform_3(%arg0: i32) -> (i32, i32) {
    %c0_i32 = arith.constant 0 : i32
    %c0_i32_0 = arith.constant 0 : i32
    return %arg0, %c0_i32 : i32, i32
  }
  func.func @transform_4(%arg0: i32) -> (i32, i32) {
    %c0_i32 = arith.constant 0 : i32
    %c0_i32_0 = arith.constant 0 : i32
    %c0_i32_1 = arith.constant 0 : i32
    return %c0_i32, %c0_i32_0 : i32, i32
  }
  func.func @transform_5(%arg0: i32) -> (i32, i32) {
    %c0_i32 = arith.constant 0 : i32
    %c0_i32_0 = arith.constant 0 : i32
    %c0_i32_1 = arith.constant 0 : i32
    return %c0_i32, %c0_i32_0 : i32, i32
  }
  func.func @transform_6(%arg0: i32) -> (i32, i32) {
    %c0_i32 = arith.constant 0 : i32
    %c0_i32_0 = arith.constant 0 : i32
    %c0_i32_1 = arith.constant 0 : i32
    return %c0_i32, %c0_i32_0 : i32, i32
  }
  func.func @transform_7(%arg0: i32) -> (i32, i32) {
    %c0_i32 = arith.constant 0 : i32
    %c0_i32_0 = arith.constant 0 : i32
    %c0_i32_1 = arith.constant 0 : i32
    return %c0_i32, %c0_i32_0 : i32, i32
  }
  func.func @transform_8(%arg0: i32) -> (i32, i32) {
    %c0_i32 = arith.constant 0 : i32
    %c0_i32_0 = arith.constant 0 : i32
    return %arg0, %c0_i32 : i32, i32
  }
  func.func @transform_9(%arg0: i32) -> (i32, i32, i32) {
    %c0_i32 = arith.constant 0 : i32
    %c0_i32_0 = arith.constant 0 : i32
    %c0_i32_1 = arith.constant 0 : i32
    return %arg0, %c0_i32, %c0_i32_0 : i32, i32, i32
  }
}

module attributes {stable_mosaic.version = 11 : i64} {
  func.func @final_matmul_kernel(%arg0: i32, %arg1: memref<16x128xbf16, #tpu.memory_space<vmem>>, %arg2: memref<16x128xbf16, #tpu.memory_space<vmem>>, %arg3: memref<16x128xbf16, #tpu.memory_space<vmem>>, %arg4: memref<16x128xbf16, #tpu.memory_space<vmem>>, %arg5: memref<16x128xbf16, #tpu.memory_space<vmem>>, %arg6: memref<128x128xbf16, #tpu.memory_space<vmem>>, %arg7: memref<128x128xbf16, #tpu.memory_space<vmem>>, %arg8: memref<128x128xbf16, #tpu.memory_space<vmem>>, %arg9: memref<128x128xbf16, #tpu.memory_space<vmem>>, %arg10: memref<128x128xbf16, #tpu.memory_space<vmem>>, %arg11: memref<1x128xf32, #tpu.memory_space<vmem>>, %arg12: memref<16x128xf32, #tpu.memory_space<vmem>>) attributes {dimension_semantics = [#tpu.dimension_semantics<parallel>], iteration_bounds = array<i64: 1>, scalar_prefetch = 0 : i64, scratch_operands = 0 : i64, tpu.core_type = #tpu.core_type<tc>, window_params = [{transform_indices = @transform_0, window_bounds = array<i64: 16, 128>}, {transform_indices = @transform_1, window_bounds = array<i64: 16, 128>}, {transform_indices = @transform_2, window_bounds = array<i64: 16, 128>}, {transform_indices = @transform_3, window_bounds = array<i64: 16, 128>}, {transform_indices = @transform_4, window_bounds = array<i64: 16, 128>}, {pipeline_mode = #tpu.pipeline_mode<synchronous>, transform_indices = @transform_5, window_bounds = array<i64: 128, 128>}, {pipeline_mode = #tpu.pipeline_mode<synchronous>, transform_indices = @transform_6, window_bounds = array<i64: 128, 128>}, {pipeline_mode = #tpu.pipeline_mode<synchronous>, transform_indices = @transform_7, window_bounds = array<i64: 128, 128>}, {pipeline_mode = #tpu.pipeline_mode<synchronous>, transform_indices = @transform_8, window_bounds = array<i64: 128, 128>}, {pipeline_mode = #tpu.pipeline_mode<synchronous>, transform_indices = @transform_9, window_bounds = array<i64: 128, 128>}, {pipeline_mode = #tpu.pipeline_mode<synchronous>, transform_indices = @transform_10, window_bounds = array<i64: 1, 128>}, {transform_indices = @transform_11, window_bounds = array<i64: 16, 128>}]} {
    %c0 = arith.constant 0 : index
    %c0_0 = arith.constant 0 : index
    %0 = vector.load %arg1[%c0, %c0_0] : memref<16x128xbf16, #tpu.memory_space<vmem>>, vector<16x128xbf16>
    %c0_1 = arith.constant 0 : index
    %c0_2 = arith.constant 0 : index
    %1 = vector.load %arg6[%c0_1, %c0_2] : memref<128x128xbf16, #tpu.memory_space<vmem>>, vector<128x128xbf16>
    %cst = arith.constant dense<0.000000e+00> : vector<16x128xf32>
    %2 = tpu.matmul %0, %1, %cst {dimension_numbers = #tpu.dot_dimension_numbers<[1], [0], [0], [1], [0, 0, 1, 1], [], []>} : vector<16x128xbf16>, vector<128x128xbf16>, vector<16x128xf32> -> vector<16x128xf32>
    %c0_3 = arith.constant 0 : index
    %c0_4 = arith.constant 0 : index
    %3 = vector.load %arg2[%c0_3, %c0_4] : memref<16x128xbf16, #tpu.memory_space<vmem>>, vector<16x128xbf16>
    %c0_5 = arith.constant 0 : index
    %c0_6 = arith.constant 0 : index
    %4 = vector.load %arg7[%c0_5, %c0_6] : memref<128x128xbf16, #tpu.memory_space<vmem>>, vector<128x128xbf16>
    %cst_7 = arith.constant dense<0.000000e+00> : vector<16x128xf32>
    %5 = tpu.matmul %3, %4, %cst_7 {dimension_numbers = #tpu.dot_dimension_numbers<[1], [0], [0], [1], [0, 0, 1, 1], [], []>} : vector<16x128xbf16>, vector<128x128xbf16>, vector<16x128xf32> -> vector<16x128xf32>
    %6 = arith.addf %2, %5 : vector<16x128xf32>
    %c0_8 = arith.constant 0 : index
    %c0_9 = arith.constant 0 : index
    %7 = vector.load %arg3[%c0_8, %c0_9] : memref<16x128xbf16, #tpu.memory_space<vmem>>, vector<16x128xbf16>
    %c0_10 = arith.constant 0 : index
    %c0_11 = arith.constant 0 : index
    %8 = vector.load %arg8[%c0_10, %c0_11] : memref<128x128xbf16, #tpu.memory_space<vmem>>, vector<128x128xbf16>
    %cst_12 = arith.constant dense<0.000000e+00> : vector<16x128xf32>
    %9 = tpu.matmul %7, %8, %cst_12 {dimension_numbers = #tpu.dot_dimension_numbers<[1], [0], [0], [1], [0, 0, 1, 1], [], []>} : vector<16x128xbf16>, vector<128x128xbf16>, vector<16x128xf32> -> vector<16x128xf32>
    %10 = arith.addf %6, %9 : vector<16x128xf32>
    %c0_13 = arith.constant 0 : index
    %c0_14 = arith.constant 0 : index
    %11 = vector.load %arg4[%c0_13, %c0_14] : memref<16x128xbf16, #tpu.memory_space<vmem>>, vector<16x128xbf16>
    %c0_15 = arith.constant 0 : index
    %c0_16 = arith.constant 0 : index
    %12 = vector.load %arg9[%c0_15, %c0_16] : memref<128x128xbf16, #tpu.memory_space<vmem>>, vector<128x128xbf16>
    %cst_17 = arith.constant dense<0.000000e+00> : vector<16x128xf32>
    %13 = tpu.matmul %11, %12, %cst_17 {dimension_numbers = #tpu.dot_dimension_numbers<[1], [0], [0], [1], [0, 0, 1, 1], [], []>} : vector<16x128xbf16>, vector<128x128xbf16>, vector<16x128xf32> -> vector<16x128xf32>
    %14 = arith.addf %10, %13 : vector<16x128xf32>
    %c0_18 = arith.constant 0 : index
    %c0_19 = arith.constant 0 : index
    %15 = vector.load %arg5[%c0_18, %c0_19] : memref<16x128xbf16, #tpu.memory_space<vmem>>, vector<16x128xbf16>
    %c0_20 = arith.constant 0 : index
    %c0_21 = arith.constant 0 : index
    %16 = vector.load %arg10[%c0_20, %c0_21] : memref<128x128xbf16, #tpu.memory_space<vmem>>, vector<128x128xbf16>
    %cst_22 = arith.constant dense<0.000000e+00> : vector<16x128xf32>
    %17 = tpu.matmul %15, %16, %cst_22 {dimension_numbers = #tpu.dot_dimension_numbers<[1], [0], [0], [1], [0, 0, 1, 1], [], []>} : vector<16x128xbf16>, vector<128x128xbf16>, vector<16x128xf32> -> vector<16x128xf32>
    %18 = arith.addf %14, %17 : vector<16x128xf32>
    %c0_23 = arith.constant 0 : index
    %c0_24 = arith.constant 0 : index
    %19 = vector.load %arg11[%c0_23, %c0_24] : memref<1x128xf32, #tpu.memory_space<vmem>>, vector<1x128xf32>
    %20 = vector.broadcast %19 : vector<1x128xf32> to vector<16x128xf32>
    %21 = arith.addf %18, %20 : vector<16x128xf32>
    %c0_25 = arith.constant 0 : index
    %c0_26 = arith.constant 0 : index
    %22 = vector.load %arg12[%c0_25, %c0_26] : memref<16x128xf32, #tpu.memory_space<vmem>>, vector<16x128xf32>
    tpu.vector_store %arg12[%c0_25, %c0_26], %21 {strides = array<i32>} : memref<16x128xf32, #tpu.memory_space<vmem>>, vector<16x128xf32>,
    return
  }
  func.func @transform_0(%arg0: i32) -> (i32, i32) {
    %c0_i32 = arith.constant 0 : i32
    %c0_i32_0 = arith.constant 0 : i32
    return %arg0, %c0_i32 : i32, i32
  }
  func.func @transform_1(%arg0: i32) -> (i32, i32) {
    %c0_i32 = arith.constant 0 : i32
    %c0_i32_0 = arith.constant 0 : i32
    return %arg0, %c0_i32 : i32, i32
  }
  func.func @transform_2(%arg0: i32) -> (i32, i32) {
    %c0_i32 = arith.constant 0 : i32
    %c0_i32_0 = arith.constant 0 : i32
    return %arg0, %c0_i32 : i32, i32
  }
  func.func @transform_3(%arg0: i32) -> (i32, i32) {
    %c0_i32 = arith.constant 0 : i32
    %c0_i32_0 = arith.constant 0 : i32
    return %arg0, %c0_i32 : i32, i32
  }
  func.func @transform_4(%arg0: i32) -> (i32, i32) {
    %c0_i32 = arith.constant 0 : i32
    %c0_i32_0 = arith.constant 0 : i32
    return %arg0, %c0_i32 : i32, i32
  }
  func.func @transform_5(%arg0: i32) -> (i32, i32) {
    %c0_i32 = arith.constant 0 : i32
    %c0_i32_0 = arith.constant 0 : i32
    %c0_i32_1 = arith.constant 0 : i32
    return %c0_i32, %c0_i32_0 : i32, i32
  }
  func.func @transform_6(%arg0: i32) -> (i32, i32) {
    %c0_i32 = arith.constant 0 : i32
    %c0_i32_0 = arith.constant 0 : i32
    %c0_i32_1 = arith.constant 0 : i32
    return %c0_i32, %c0_i32_0 : i32, i32
  }
  func.func @transform_7(%arg0: i32) -> (i32, i32) {
    %c0_i32 = arith.constant 0 : i32
    %c0_i32_0 = arith.constant 0 : i32
    %c0_i32_1 = arith.constant 0 : i32
    return %c0_i32, %c0_i32_0 : i32, i32
  }
  func.func @transform_8(%arg0: i32) -> (i32, i32) {
    %c0_i32 = arith.constant 0 : i32
    %c0_i32_0 = arith.constant 0 : i32
    %c0_i32_1 = arith.constant 0 : i32
    return %c0_i32, %c0_i32_0 : i32, i32
  }
  func.func @transform_9(%arg0: i32) -> (i32, i32) {
    %c0_i32 = arith.constant 0 : i32
    %c0_i32_0 = arith.constant 0 : i32
    %c0_i32_1 = arith.constant 0 : i32
    return %c0_i32, %c0_i32_0 : i32, i32
  }
  func.func @transform_10(%arg0: i32) -> (i32, i32) {
    %c0_i32 = arith.constant 0 : i32
    %c0_i32_0 = arith.constant 0 : i32
    %c0_i32_1 = arith.constant 0 : i32
    return %c0_i32, %c0_i32_0 : i32, i32
  }
  func.func @transform_11(%arg0: i32) -> (i32, i32) {
    %c0_i32 = arith.constant 0 : i32
    %c0_i32_0 = arith.constant 0 : i32
    return %arg0, %c0_i32 : i32, i32
  }
}

</mosaic_0001>

<llo_original>
// kernel: generator_forward.4
$region0: #{generator_forward.4}
  #allocation0 [shape = 'u32[]', space=smem, size = 0x4, offset = 0x4, fixed_abs, tag = 'smem constant byte address 0x4 - core index']
  #allocation1 [shape = 'u32[144,128]{1,0:T(1,128)}', space=vmem, size = 0x12000, scoped, tag = 'internal scratch']
  %s0 = inlined_call_operand.vmem [shape: bf16[16,128], index: 0, kind: input, shape index: {}]
  %s1 = inlined_call_operand.vmem [shape: bf16[16,128], index: 1, kind: input, shape index: {}]
  %s2 = inlined_call_operand.vmem [shape: bf16[128,128], index: 2, kind: input, shape index: {}]
  %s3 = inlined_call_operand.vmem [shape: bf16[128,128], index: 3, kind: input, shape index: {}]
  %s4 = inlined_call_operand.vmem [shape: f32[16,128], index: 4, kind: output, shape index: {0}]
  %s5 = inlined_call_operand.vmem [shape: f32[1,2,128], index: 5, kind: output, shape index: {1}]
  %6 = xla_tuple %s4, %s5
  %s7 = sld [smem:[#allocation0]]
  $region34: #{generator_forward.4} parent=0
    _
  %s9 = ssub.s32 1, %s7
  %s10 = scalar_select 0, %s9, %s7
  // Predicated region
  $region2: #{generator_forward.4} parent=0 // pred_check
    _
  $region3: #{generator_forward.4} parent=0 // pred_check_branch
    %12 = sbr.rel (0) target = $region5
  $region4: #{generator_forward.4} parent=0 // pred_region
    _
  $region5: #{generator_forward.4} parent=0 // pred_fallthru
    _
  // Predicated region
  $region6: #{generator_forward.4} parent=0 // pred_check
    _
  $region7: #{generator_forward.4} parent=0 // pred_check_branch
    %14 = sbr.rel (0) target = $region9
  $region8: #{generator_forward.4} parent=0 // pred_region
    _
  $region9: #{generator_forward.4} parent=0 // pred_fallthru
    _
  // Predicated region
  $region10: #{generator_forward.4} parent=0 // pred_check
    _
  $region11: #{generator_forward.4} parent=0 // pred_check_branch
    %16 = sbr.rel (0) target = $region13
  $region12: #{generator_forward.4} parent=0 // pred_region
    _
  $region13: #{generator_forward.4} parent=0 // pred_fallthru
    _
  // Predicated region
  $region14: #{generator_forward.4} parent=0 // pred_check
    _
  $region15: #{generator_forward.4} parent=0 // pred_check_branch
    %18 = sbr.rel (0) target = $region17
  $region16: #{generator_forward.4} parent=0 // pred_region
    _
  $region17: #{generator_forward.4} parent=0 // pred_fallthru
    _
  %v20 = vld [vmem:[%s0] sm:$0xf]
  %v21 = vld [vmem:[%s0 + $0x4] sm:$0xf]
  %v22 = vld [vmem:[%s2] sm:$0xf]
  %v23 = vld [vmem:[%s2 + $0x4] sm:$0xf]
  %v24 = vld [vmem:[%s2 + $0x8] sm:$0xf]
  %v25 = vld [vmem:[%s2 + $0xc] sm:$0xf]
  %v26 = vld [vmem:[%s2 + $0x10] sm:$0xf]
  %v27 = vld [vmem:[%s2 + $0x14] sm:$0xf]
  %v28 = vld [vmem:[%s2 + $0x18] sm:$0xf]
  %v29 = vld [vmem:[%s2 + $0x1c] sm:$0xf]
  %v30 = vld [vmem:[%s2 + $0x20] sm:$0xf]
  %v31 = vld [vmem:[%s2 + $0x24] sm:$0xf]
  %v32 = vld [vmem:[%s2 + $0x28] sm:$0xf]
  %v33 = vld [vmem:[%s2 + $0x2c] sm:$0xf]
  %v34 = vld [vmem:[%s2 + $0x30] sm:$0xf]
  %v35 = vld [vmem:[%s2 + $0x34] sm:$0xf]
  %v36 = vld [vmem:[%s2 + $0x38] sm:$0xf]
  %v37 = vld [vmem:[%s2 + $0x3c] sm:$0xf]
  %v38 = vld [vmem:[%s1] sm:$0xf]
  %v39 = vld [vmem:[%s1 + $0x4] sm:$0xf]
  %v40 = vld [vmem:[%s3] sm:$0xf]
  %v41 = vld [vmem:[%s3 + $0x4] sm:$0xf]
  %v42 = vld [vmem:[%s3 + $0x8] sm:$0xf]
  %v43 = vld [vmem:[%s3 + $0xc] sm:$0xf]
  %v44 = vld [vmem:[%s3 + $0x10] sm:$0xf]
  %v45 = vld [vmem:[%s3 + $0x14] sm:$0xf]
  %v46 = vld [vmem:[%s3 + $0x18] sm:$0xf]
  %v47 = vld [vmem:[%s3 + $0x1c] sm:$0xf]
  %v48 = vld [vmem:[%s3 + $0x20] sm:$0xf]
  %v49 = vld [vmem:[%s3 + $0x24] sm:$0xf]
  %v50 = vld [vmem:[%s3 + $0x28] sm:$0xf]
  %v51 = vld [vmem:[%s3 + $0x2c] sm:$0xf]
  %v52 = vld [vmem:[%s3 + $0x30] sm:$0xf]
  %v53 = vld [vmem:[%s3 + $0x34] sm:$0xf]
  %v54 = vld [vmem:[%s3 + $0x38] sm:$0xf]
  %v55 = vld [vmem:[%s3 + $0x3c] sm:$0xf]
  %v58 = vunpack.c.l.b16 %v38
  %v59 = vunpack.c.l.b16 %v39
  %v60 = vpack.c.b16 %v59, %v58
  %v78 = vunpack.c.l.b16 %v40
  %v79 = vunpack.c.l.b16 %v41
  %v80 = vunpack.c.l.b16 %v42
  %v81 = vunpack.c.l.b16 %v43
  %v82 = vunpack.c.l.b16 %v44
  %v83 = vunpack.c.l.b16 %v45
  %v84 = vunpack.c.l.b16 %v46
  %v85 = vunpack.c.l.b16 %v47
  %v86 = vunpack.c.l.b16 %v48
  %v87 = vunpack.c.l.b16 %v49
  %v88 = vunpack.c.l.b16 %v50
  %v89 = vunpack.c.l.b16 %v51
  %v90 = vunpack.c.l.b16 %v52
  %v91 = vunpack.c.l.b16 %v53
  %v92 = vunpack.c.l.b16 %v54
  %v93 = vunpack.c.l.b16 %v55
  %v94 = vpack.c.b16 %v79, %v78
  %v95 = vpack.c.b16 %v81, %v80
  %v96 = vpack.c.b16 %v83, %v82
  %v97 = vpack.c.b16 %v85, %v84
  %v98 = vpack.c.b16 %v87, %v86
  %v99 = vpack.c.b16 %v89, %v88
  %v100 = vpack.c.b16 %v91, %v90
  %v101 = vpack.c.b16 %v93, %v92
  %110 = vmatprep.subr.bf16.mxu0 0
  %111 = vmatpush1.bf16.msra.mxu0 %v101
  %112 = vmatprep.subr.bf16.mxu0 0
  %113 = vmatpush1.bf16.msra.mxu0 %v100
  %114 = vmatprep.subr.bf16.mxu0 0
  %115 = vmatpush1.bf16.msra.mxu0 %v99
  %116 = vmatprep.subr.bf16.mxu0 0
  %117 = vmatpush1.bf16.msra.mxu0 %v98
  %118 = vmatprep.subr.bf16.mxu0 0
  %119 = vmatpush1.bf16.msra.mxu0 %v97
  %120 = vmatprep.subr.bf16.mxu0 0
  %121 = vmatpush1.bf16.msra.mxu0 %v96
  %122 = vmatprep.subr.bf16.mxu0 0
  %123 = vmatpush1.bf16.msra.mxu0 %v95
  %124 = vmatprep.subr.bf16.mxu0 0
  %125 = vmatpush1.bf16.msra.mxu0 %v94
  %126 = vmatprep.subr.bf16.mxu0 0
  %127 = vmatpush2.bf16.msra.mxu0 0
  %128 = vmatprep.subr.bf16.mxu0 0
  %129 = vmatpush2.bf16.msra.mxu0 0
  %130 = vmatprep.subr.bf16.mxu0 0
  %131 = vmatpush2.bf16.msra.mxu0 0
  %132 = vmatprep.subr.bf16.mxu0 0
  %133 = vmatpush2.bf16.msra.mxu0 0
  %134 = vmatprep.subr.bf16.mxu0 0
  %135 = vmatpush2.bf16.msra.mxu0 0
  %136 = vmatprep.subr.bf16.mxu0 0
  %137 = vmatpush2.bf16.msra.mxu0 0
  %138 = vmatprep.subr.bf16.mxu0 0
  %139 = vmatpush2.bf16.msra.mxu0 0
  %140 = vmatprep.subr.bf16.mxu0 0
  %141 = vmatpush2.bf16.msra.mxu0 0
  %142 = vmatprep.mubr.bf16.mxu0 0
  %143 = vmatmul.mubr.bf16.gmra.mxu0 %v60
  %v144 = vpop.f32.mrf.mxu0
  %v145 = vadd.f32 0.0, %v144
  %v146 = vpop.f32.mrf.mxu0
  %v147 = vpop.f32.mrf.mxu0
  %v148 = vadd.f32 0.0, %v147
  %v149 = vpop.f32.mrf.mxu0
  %150 = vdwg.mxu0
  %v153 = vunpack.c.l.b16 %v20
  %v154 = vunpack.c.l.b16 %v21
  %v155 = vpack.c.b16 %v154, %v153
  %v173 = vunpack.c.l.b16 %v22
  %v174 = vunpack.c.l.b16 %v23
  %v175 = vunpack.c.l.b16 %v24
  %v176 = vunpack.c.l.b16 %v25
  %v177 = vunpack.c.l.b16 %v26
  %v178 = vunpack.c.l.b16 %v27
  %v179 = vunpack.c.l.b16 %v28
  %v180 = vunpack.c.l.b16 %v29
  %v181 = vunpack.c.l.b16 %v30
  %v182 = vunpack.c.l.b16 %v31
  %v183 = vunpack.c.l.b16 %v32
  %v184 = vunpack.c.l.b16 %v33
  %v185 = vunpack.c.l.b16 %v34
  %v186 = vunpack.c.l.b16 %v35
  %v187 = vunpack.c.l.b16 %v36
  %v188 = vunpack.c.l.b16 %v37
  %v189 = vpack.c.b16 %v174, %v173
  %v190 = vpack.c.b16 %v176, %v175
  %v191 = vpack.c.b16 %v178, %v177
  %v192 = vpack.c.b16 %v180, %v179
  %v193 = vpack.c.b16 %v182, %v181
  %v194 = vpack.c.b16 %v184, %v183
  %v195 = vpack.c.b16 %v186, %v185
  %v196 = vpack.c.b16 %v188, %v187
  %205 = vmatprep.subr.bf16.mxu0 0
  %206 = vmatpush1.bf16.msra.mxu0 %v196
  %207 = vmatprep.subr.bf16.mxu0 0
  %208 = vmatpush1.bf16.msra.mxu0 %v195
  %209 = vmatprep.subr.bf16.mxu0 0
  %210 = vmatpush1.bf16.msra.mxu0 %v194
  %211 = vmatprep.subr.bf16.mxu0 0
  %212 = vmatpush1.bf16.msra.mxu0 %v193
  %213 = vmatprep.subr.bf16.mxu0 0
  %214 = vmatpush1.bf16.msra.mxu0 %v192
  %215 = vmatprep.subr.bf16.mxu0 0
  %216 = vmatpush1.bf16.msra.mxu0 %v191
  %217 = vmatprep.subr.bf16.mxu0 0
  %218 = vmatpush1.bf16.msra.mxu0 %v190
  %219 = vmatprep.subr.bf16.mxu0 0
  %220 = vmatpush1.bf16.msra.mxu0 %v189
  %221 = vmatprep.subr.bf16.mxu0 0
  %222 = vmatpush2.bf16.msra.mxu0 0
  %223 = vmatprep.subr.bf16.mxu0 0
  %224 = vmatpush2.bf16.msra.mxu0 0
  %225 = vmatprep.subr.bf16.mxu0 0
  %226 = vmatpush2.bf16.msra.mxu0 0
  %227 = vmatprep.subr.bf16.mxu0 0
  %228 = vmatpush2.bf16.msra.mxu0 0
  %229 = vmatprep.subr.bf16.mxu0 0
  %230 = vmatpush2.bf16.msra.mxu0 0
  %231 = vmatprep.subr.bf16.mxu0 0
  %232 = vmatpush2.bf16.msra.mxu0 0
  %233 = vmatprep.subr.bf16.mxu0 0
  %234 = vmatpush2.bf16.msra.mxu0 0
  %235 = vmatprep.subr.bf16.mxu0 0
  %236 = vmatpush2.bf16.msra.mxu0 0
  %237 = vmatprep.mubr.bf16.mxu0 0
  %238 = vmatmul.mubr.bf16.gmra.mxu0 %v155
  %v239 = vpop.f32.mrf.mxu0
  %v240 = vadd.f32 %v145, %v239
  %v241 = vpop.f32.mrf.mxu0
  %v242 = vpop.f32.mrf.mxu0
  %v243 = vadd.f32 %v148, %v242
  %v244 = vpop.f32.mrf.mxu0
  %245 = vdwg.mxu0
  %246 = vst [vmem:[%s4] sm:$0xff] %v240
  %247 = vst [vmem:[%s4 + $0x8] sm:$0xff] %v243
  %v248 = vadd.f32 %v240, %v243
  %v249 = vrot.slane %v248, 4
  %v250 = vadd.f32 %v248, %v249
  %v251 = vrot.slane %v250, 2
  %v252 = vadd.f32 %v250, %v251
  %v253 = vrot.slane %v252, 1
  %v254 = vadd.f32 %v252, %v253
  %v255 = vmul.f32 %v240, %v240
  %v256 = vmul.f32 %v243, %v243
  %v257 = vadd.f32 %v255, %v256
  %v258 = vrot.slane %v257, 4
  %v259 = vadd.f32 %v257, %v258
  %v260 = vrot.slane %v259, 2
  %v261 = vadd.f32 %v259, %v260
  %v262 = vrot.slane %v261, 1
  %v263 = vadd.f32 %v261, %v262
  %vm264 = vcmask 1040384
  %v265 = vsel %vm264, %v254, %v263
  %266 = vst [vmem:[%s5] sm:$0x3] %v265
  // Predicated region
  $region18: #{generator_forward.4} parent=0 // pred_check
    _
  $region19: #{generator_forward.4} parent=0 // pred_check_branch
    %268 = sbr.rel (0) target = $region21
  $region20: #{generator_forward.4} parent=0 // pred_region
    _
  $region21: #{generator_forward.4} parent=0 // pred_fallthru
    _
  // Predicated region
  $region22: #{generator_forward.4} parent=0 // pred_check
    _
  $region23: #{generator_forward.4} parent=0 // pred_check_branch
    %270 = sbr.rel (0) target = $region25
  $region24: #{generator_forward.4} parent=0 // pred_region
    _
  $region25: #{generator_forward.4} parent=0 // pred_fallthru
    _
  // Predicated region
  $region26: #{generator_forward.4} parent=0 // pred_check
    _
  $region27: #{generator_forward.4} parent=0 // pred_check_branch
    %272 = sbr.rel (0) target = $region29
  $region28: #{generator_forward.4} parent=0 // pred_region
    _
  $region29: #{generator_forward.4} parent=0 // pred_fallthru
    _
  // Predicated region
  $region30: #{generator_forward.4} parent=0 // pred_check
    _
  $region31: #{generator_forward.4} parent=0 // pred_check_branch
    %274 = sbr.rel (0) target = $region33
  $region32: #{generator_forward.4} parent=0 // pred_region
    _
  $region33: #{generator_forward.4} parent=0 // pred_fallthru
    _

// kernel: generator_forward.5
$region0: #{generator_forward.5}
  #allocation0 [shape = 'u32[]', space=smem, size = 0x4, offset = 0x4, fixed_abs, tag = 'smem constant byte address 0x4 - core index']
  #allocation1 [shape = 'u32[144,128]{1,0:T(1,128)}', space=vmem, size = 0x12000, scoped, tag = 'internal scratch']
  %s0 = inlined_call_operand.vmem [shape: bf16[16,128], index: 0, kind: input, shape index: {}]
  %s1 = inlined_call_operand.vmem [shape: bf16[16,128], index: 1, kind: input, shape index: {}]
  %s2 = inlined_call_operand.vmem [shape: bf16[16,128], index: 2, kind: input, shape index: {}]
  %s3 = inlined_call_operand.vmem [shape: bf16[128,128], index: 3, kind: input, shape index: {}]
  %s4 = inlined_call_operand.vmem [shape: bf16[128,128], index: 4, kind: input, shape index: {}]
  %s5 = inlined_call_operand.vmem [shape: bf16[128,128], index: 5, kind: input, shape index: {}]
  %s6 = inlined_call_operand.vmem [shape: f32[16,128], index: 6, kind: output, shape index: {0}]
  %s7 = inlined_call_operand.vmem [shape: f32[1,2,128], index: 7, kind: output, shape index: {1}]
  %8 = xla_tuple %s6, %s7
  %s9 = sld [smem:[#allocation0]]
  $region42: #{generator_forward.5} parent=0
    _
  %s11 = ssub.s32 1, %s9
  %s12 = scalar_select 0, %s11, %s9
  // Predicated region
  $region2: #{generator_forward.5} parent=0 // pred_check
    _
  $region3: #{generator_forward.5} parent=0 // pred_check_branch
    %14 = sbr.rel (0) target = $region5
  $region4: #{generator_forward.5} parent=0 // pred_region
    _
  $region5: #{generator_forward.5} parent=0 // pred_fallthru
    _
  // Predicated region
  $region6: #{generator_forward.5} parent=0 // pred_check
    _
  $region7: #{generator_forward.5} parent=0 // pred_check_branch
    %16 = sbr.rel (0) target = $region9
  $region8: #{generator_forward.5} parent=0 // pred_region
    _
  $region9: #{generator_forward.5} parent=0 // pred_fallthru
    _
  // Predicated region
  $region10: #{generator_forward.5} parent=0 // pred_check
    _
  $region11: #{generator_forward.5} parent=0 // pred_check_branch
    %18 = sbr.rel (0) target = $region13
  $region12: #{generator_forward.5} parent=0 // pred_region
    _
  $region13: #{generator_forward.5} parent=0 // pred_fallthru
    _
  // Predicated region
  $region14: #{generator_forward.5} parent=0 // pred_check
    _
  $region15: #{generator_forward.5} parent=0 // pred_check_branch
    %20 = sbr.rel (0) target = $region17
  $region16: #{generator_forward.5} parent=0 // pred_region
    _
  $region17: #{generator_forward.5} parent=0 // pred_fallthru
    _
  // Predicated region
  $region18: #{generator_forward.5} parent=0 // pred_check
    _
  $region19: #{generator_forward.5} parent=0 // pred_check_branch
    %22 = sbr.rel (0) target = $region21
  $region20: #{generator_forward.5} parent=0 // pred_region
    _
  $region21: #{generator_forward.5} parent=0 // pred_fallthru
    _
  // Predicated region
  $region22: #{generator_forward.5} parent=0 // pred_check
    _
  $region23: #{generator_forward.5} parent=0 // pred_check_branch
    %24 = sbr.rel (0) target = $region25
  $region24: #{generator_forward.5} parent=0 // pred_region
    _
  $region25: #{generator_forward.5} parent=0 // pred_fallthru
    _
  %v26 = vld [vmem:[%s0] sm:$0xf]
  %v27 = vld [vmem:[%s0 + $0x4] sm:$0xf]
  %v28 = vld [vmem:[%s3] sm:$0xf]
  %v29 = vld [vmem:[%s3 + $0x4] sm:$0xf]
  %v30 = vld [vmem:[%s3 + $0x8] sm:$0xf]
  %v31 = vld [vmem:[%s3 + $0xc] sm:$0xf]
  %v32 = vld [vmem:[%s3 + $0x10] sm:$0xf]
  %v33 = vld [vmem:[%s3 + $0x14] sm:$0xf]
  %v34 = vld [vmem:[%s3 + $0x18] sm:$0xf]
  %v35 = vld [vmem:[%s3 + $0x1c] sm:$0xf]
  %v36 = vld [vmem:[%s3 + $0x20] sm:$0xf]
  %v37 = vld [vmem:[%s3 + $0x24] sm:$0xf]
  %v38 = vld [vmem:[%s3 + $0x28] sm:$0xf]
  %v39 = vld [vmem:[%s3 + $0x2c] sm:$0xf]
  %v40 = vld [vmem:[%s3 + $0x30] sm:$0xf]
  %v41 = vld [vmem:[%s3 + $0x34] sm:$0xf]
  %v42 = vld [vmem:[%s3 + $0x38] sm:$0xf]
  %v43 = vld [vmem:[%s3 + $0x3c] sm:$0xf]
  %v44 = vld [vmem:[%s1] sm:$0xf]
  %v45 = vld [vmem:[%s1 + $0x4] sm:$0xf]
  %v46 = vld [vmem:[%s4] sm:$0xf]
  %v47 = vld [vmem:[%s4 + $0x4] sm:$0xf]
  %v48 = vld [vmem:[%s4 + $0x8] sm:$0xf]
  %v49 = vld [vmem:[%s4 + $0xc] sm:$0xf]
  %v50 = vld [vmem:[%s4 + $0x10] sm:$0xf]
  %v51 = vld [vmem:[%s4 + $0x14] sm:$0xf]
  %v52 = vld [vmem:[%s4 + $0x18] sm:$0xf]
  %v53 = vld [vmem:[%s4 + $0x1c] sm:$0xf]
  %v54 = vld [vmem:[%s4 + $0x20] sm:$0xf]
  %v55 = vld [vmem:[%s4 + $0x24] sm:$0xf]
  %v56 = vld [vmem:[%s4 + $0x28] sm:$0xf]
  %v57 = vld [vmem:[%s4 + $0x2c] sm:$0xf]
  %v58 = vld [vmem:[%s4 + $0x30] sm:$0xf]
  %v59 = vld [vmem:[%s4 + $0x34] sm:$0xf]
  %v60 = vld [vmem:[%s4 + $0x38] sm:$0xf]
  %v61 = vld [vmem:[%s4 + $0x3c] sm:$0xf]
  %v64 = vunpack.c.l.b16 %v44
  %v65 = vunpack.c.l.b16 %v45
  %v66 = vpack.c.b16 %v65, %v64
  %v84 = vunpack.c.l.b16 %v46
  %v85 = vunpack.c.l.b16 %v47
  %v86 = vunpack.c.l.b16 %v48
  %v87 = vunpack.c.l.b16 %v49
  %v88 = vunpack.c.l.b16 %v50
  %v89 = vunpack.c.l.b16 %v51
  %v90 = vunpack.c.l.b16 %v52
  %v91 = vunpack.c.l.b16 %v53
  %v92 = vunpack.c.l.b16 %v54
  %v93 = vunpack.c.l.b16 %v55
  %v94 = vunpack.c.l.b16 %v56
  %v95 = vunpack.c.l.b16 %v57
  %v96 = vunpack.c.l.b16 %v58
  %v97 = vunpack.c.l.b16 %v59
  %v98 = vunpack.c.l.b16 %v60
  %v99 = vunpack.c.l.b16 %v61
  %v100 = vpack.c.b16 %v85, %v84
  %v101 = vpack.c.b16 %v87, %v86
  %v102 = vpack.c.b16 %v89, %v88
  %v103 = vpack.c.b16 %v91, %v90
  %v104 = vpack.c.b16 %v93, %v92
  %v105 = vpack.c.b16 %v95, %v94
  %v106 = vpack.c.b16 %v97, %v96
  %v107 = vpack.c.b16 %v99, %v98
  %116 = vmatprep.subr.bf16.mxu0 0
  %117 = vmatpush1.bf16.msra.mxu0 %v107
  %118 = vmatprep.subr.bf16.mxu0 0
  %119 = vmatpush1.bf16.msra.mxu0 %v106
  %120 = vmatprep.subr.bf16.mxu0 0
  %121 = vmatpush1.bf16.msra.mxu0 %v105
  %122 = vmatprep.subr.bf16.mxu0 0
  %123 = vmatpush1.bf16.msra.mxu0 %v104
  %124 = vmatprep.subr.bf16.mxu0 0
  %125 = vmatpush1.bf16.msra.mxu0 %v103
  %126 = vmatprep.subr.bf16.mxu0 0
  %127 = vmatpush1.bf16.msra.mxu0 %v102
  %128 = vmatprep.subr.bf16.mxu0 0
  %129 = vmatpush1.bf16.msra.mxu0 %v101
  %130 = vmatprep.subr.bf16.mxu0 0
  %131 = vmatpush1.bf16.msra.mxu0 %v100
  %132 = vmatprep.subr.bf16.mxu0 0
  %133 = vmatpush2.bf16.msra.mxu0 0
  %134 = vmatprep.subr.bf16.mxu0 0
  %135 = vmatpush2.bf16.msra.mxu0 0
  %136 = vmatprep.subr.bf16.mxu0 0
  %137 = vmatpush2.bf16.msra.mxu0 0
  %138 = vmatprep.subr.bf16.mxu0 0
  %139 = vmatpush2.bf16.msra.mxu0 0
  %140 = vmatprep.subr.bf16.mxu0 0
  %141 = vmatpush2.bf16.msra.mxu0 0
  %142 = vmatprep.subr.bf16.mxu0 0
  %143 = vmatpush2.bf16.msra.mxu0 0
  %144 = vmatprep.subr.bf16.mxu0 0
  %145 = vmatpush2.bf16.msra.mxu0 0
  %146 = vmatprep.subr.bf16.mxu0 0
  %147 = vmatpush2.bf16.msra.mxu0 0
  %148 = vmatprep.mubr.bf16.mxu0 0
  %149 = vmatmul.mubr.bf16.gmra.mxu0 %v66
  %v150 = vpop.f32.mrf.mxu0
  %v151 = vadd.f32 0.0, %v150
  %v152 = vpop.f32.mrf.mxu0
  %v153 = vpop.f32.mrf.mxu0
  %v154 = vadd.f32 0.0, %v153
  %v155 = vpop.f32.mrf.mxu0
  %156 = vdwg.mxu0
  %v159 = vunpack.c.l.b16 %v26
  %v160 = vunpack.c.l.b16 %v27
  %v161 = vpack.c.b16 %v160, %v159
  %v179 = vunpack.c.l.b16 %v28
  %v180 = vunpack.c.l.b16 %v29
  %v181 = vunpack.c.l.b16 %v30
  %v182 = vunpack.c.l.b16 %v31
  %v183 = vunpack.c.l.b16 %v32
  %v184 = vunpack.c.l.b16 %v33
  %v185 = vunpack.c.l.b16 %v34
  %v186 = vunpack.c.l.b16 %v35
  %v187 = vunpack.c.l.b16 %v36
  %v188 = vunpack.c.l.b16 %v37
  %v189 = vunpack.c.l.b16 %v38
  %v190 = vunpack.c.l.b16 %v39
  %v191 = vunpack.c.l.b16 %v40
  %v192 = vunpack.c.l.b16 %v41
  %v193 = vunpack.c.l.b16 %v42
  %v194 = vunpack.c.l.b16 %v43
  %v195 = vpack.c.b16 %v180, %v179
  %v196 = vpack.c.b16 %v182, %v181
  %v197 = vpack.c.b16 %v184, %v183
  %v198 = vpack.c.b16 %v186, %v185
  %v199 = vpack.c.b16 %v188, %v187
  %v200 = vpack.c.b16 %v190, %v189
  %v201 = vpack.c.b16 %v192, %v191
  %v202 = vpack.c.b16 %v194, %v193
  %211 = vmatprep.subr.bf16.mxu0 0
  %212 = vmatpush1.bf16.msra.mxu0 %v202
  %213 = vmatprep.subr.bf16.mxu0 0
  %214 = vmatpush1.bf16.msra.mxu0 %v201
  %215 = vmatprep.subr.bf16.mxu0 0
  %216 = vmatpush1.bf16.msra.mxu0 %v200
  %217 = vmatprep.subr.bf16.mxu0 0
  %218 = vmatpush1.bf16.msra.mxu0 %v199
  %219 = vmatprep.subr.bf16.mxu0 0
  %220 = vmatpush1.bf16.msra.mxu0 %v198
  %221 = vmatprep.subr.bf16.mxu0 0
  %222 = vmatpush1.bf16.msra.mxu0 %v197
  %223 = vmatprep.subr.bf16.mxu0 0
  %224 = vmatpush1.bf16.msra.mxu0 %v196
  %225 = vmatprep.subr.bf16.mxu0 0
  %226 = vmatpush1.bf16.msra.mxu0 %v195
  %227 = vmatprep.subr.bf16.mxu0 0
  %228 = vmatpush2.bf16.msra.mxu0 0
  %229 = vmatprep.subr.bf16.mxu0 0
  %230 = vmatpush2.bf16.msra.mxu0 0
  %231 = vmatprep.subr.bf16.mxu0 0
  %232 = vmatpush2.bf16.msra.mxu0 0
  %233 = vmatprep.subr.bf16.mxu0 0
  %234 = vmatpush2.bf16.msra.mxu0 0
  %235 = vmatprep.subr.bf16.mxu0 0
  %236 = vmatpush2.bf16.msra.mxu0 0
  %237 = vmatprep.subr.bf16.mxu0 0
  %238 = vmatpush2.bf16.msra.mxu0 0
  %239 = vmatprep.subr.bf16.mxu0 0
  %240 = vmatpush2.bf16.msra.mxu0 0
  %241 = vmatprep.subr.bf16.mxu0 0
  %242 = vmatpush2.bf16.msra.mxu0 0
  %243 = vmatprep.mubr.bf16.mxu0 0
  %244 = vmatmul.mubr.bf16.gmra.mxu0 %v161
  %v245 = vpop.f32.mrf.mxu0
  %v246 = vadd.f32 %v151, %v245
  %v247 = vpop.f32.mrf.mxu0
  %v248 = vpop.f32.mrf.mxu0
  %v249 = vadd.f32 %v154, %v248
  %v250 = vpop.f32.mrf.mxu0
  %251 = vdwg.mxu0
  %v252 = vld [vmem:[%s2] sm:$0xf]
  %v253 = vld [vmem:[%s2 + $0x4] sm:$0xf]
  %v254 = vld [vmem:[%s5] sm:$0xf]
  %v255 = vld [vmem:[%s5 + $0x4] sm:$0xf]
  %v256 = vld [vmem:[%s5 + $0x8] sm:$0xf]
  %v257 = vld [vmem:[%s5 + $0xc] sm:$0xf]
  %v258 = vld [vmem:[%s5 + $0x10] sm:$0xf]
  %v259 = vld [vmem:[%s5 + $0x14] sm:$0xf]
  %v260 = vld [vmem:[%s5 + $0x18] sm:$0xf]
  %v261 = vld [vmem:[%s5 + $0x1c] sm:$0xf]
  %v262 = vld [vmem:[%s5 + $0x20] sm:$0xf]
  %v263 = vld [vmem:[%s5 + $0x24] sm:$0xf]
  %v264 = vld [vmem:[%s5 + $0x28] sm:$0xf]
  %v265 = vld [vmem:[%s5 + $0x2c] sm:$0xf]
  %v266 = vld [vmem:[%s5 + $0x30] sm:$0xf]
  %v267 = vld [vmem:[%s5 + $0x34] sm:$0xf]
  %v268 = vld [vmem:[%s5 + $0x38] sm:$0xf]
  %v269 = vld [vmem:[%s5 + $0x3c] sm:$0xf]
  %v272 = vunpack.c.l.b16 %v252
  %v273 = vunpack.c.l.b16 %v253
  %v274 = vpack.c.b16 %v273, %v272
  %v292 = vunpack.c.l.b16 %v254
  %v293 = vunpack.c.l.b16 %v255
  %v294 = vunpack.c.l.b16 %v256
  %v295 = vunpack.c.l.b16 %v257
  %v296 = vunpack.c.l.b16 %v258
  %v297 = vunpack.c.l.b16 %v259
  %v298 = vunpack.c.l.b16 %v260
  %v299 = vunpack.c.l.b16 %v261
  %v300 = vunpack.c.l.b16 %v262
  %v301 = vunpack.c.l.b16 %v263
  %v302 = vunpack.c.l.b16 %v264
  %v303 = vunpack.c.l.b16 %v265
  %v304 = vunpack.c.l.b16 %v266
  %v305 = vunpack.c.l.b16 %v267
  %v306 = vunpack.c.l.b16 %v268
  %v307 = vunpack.c.l.b16 %v269
  %v308 = vpack.c.b16 %v293, %v292
  %v309 = vpack.c.b16 %v295, %v294
  %v310 = vpack.c.b16 %v297, %v296
  %v311 = vpack.c.b16 %v299, %v298
  %v312 = vpack.c.b16 %v301, %v300
  %v313 = vpack.c.b16 %v303, %v302
  %v314 = vpack.c.b16 %v305, %v304
  %v315 = vpack.c.b16 %v307, %v306
  %324 = vmatprep.subr.bf16.mxu0 0
  %325 = vmatpush1.bf16.msra.mxu0 %v315
  %326 = vmatprep.subr.bf16.mxu0 0
  %327 = vmatpush1.bf16.msra.mxu0 %v314
  %328 = vmatprep.subr.bf16.mxu0 0
  %329 = vmatpush1.bf16.msra.mxu0 %v313
  %330 = vmatprep.subr.bf16.mxu0 0
  %331 = vmatpush1.bf16.msra.mxu0 %v312
  %332 = vmatprep.subr.bf16.mxu0 0
  %333 = vmatpush1.bf16.msra.mxu0 %v311
  %334 = vmatprep.subr.bf16.mxu0 0
  %335 = vmatpush1.bf16.msra.mxu0 %v310
  %336 = vmatprep.subr.bf16.mxu0 0
  %337 = vmatpush1.bf16.msra.mxu0 %v309
  %338 = vmatprep.subr.bf16.mxu0 0
  %339 = vmatpush1.bf16.msra.mxu0 %v308
  %340 = vmatprep.subr.bf16.mxu0 0
  %341 = vmatpush2.bf16.msra.mxu0 0
  %342 = vmatprep.subr.bf16.mxu0 0
  %343 = vmatpush2.bf16.msra.mxu0 0
  %344 = vmatprep.subr.bf16.mxu0 0
  %345 = vmatpush2.bf16.msra.mxu0 0
  %346 = vmatprep.subr.bf16.mxu0 0
  %347 = vmatpush2.bf16.msra.mxu0 0
  %348 = vmatprep.subr.bf16.mxu0 0
  %349 = vmatpush2.bf16.msra.mxu0 0
  %350 = vmatprep.subr.bf16.mxu0 0
  %351 = vmatpush2.bf16.msra.mxu0 0
  %352 = vmatprep.subr.bf16.mxu0 0
  %353 = vmatpush2.bf16.msra.mxu0 0
  %354 = vmatprep.subr.bf16.mxu0 0
  %355 = vmatpush2.bf16.msra.mxu0 0
  %356 = vmatprep.mubr.bf16.mxu0 0
  %357 = vmatmul.mubr.bf16.gmra.mxu0 %v274
  %v358 = vpop.f32.mrf.mxu0
  %v359 = vadd.f32 0.0, %v358
  %v360 = vpop.f32.mrf.mxu0
  %v361 = vpop.f32.mrf.mxu0
  %v362 = vadd.f32 0.0, %v361
  %v363 = vpop.f32.mrf.mxu0
  %364 = vdwg.mxu0
  %v365 = vadd.f32 %v246, %v359
  %v366 = vadd.f32 %v249, %v362
  %367 = vst [vmem:[%s6] sm:$0xff] %v365
  %368 = vst [vmem:[%s6 + $0x8] sm:$0xff] %v366
  %v369 = vadd.f32 %v365, %v366
  %v370 = vrot.slane %v369, 4
  %v371 = vadd.f32 %v369, %v370
  %v372 = vrot.slane %v371, 2
  %v373 = vadd.f32 %v371, %v372
  %v374 = vrot.slane %v373, 1
  %v375 = vadd.f32 %v373, %v374
  %v376 = vmul.f32 %v365, %v365
  %v377 = vmul.f32 %v366, %v366
  %v378 = vadd.f32 %v376, %v377
  %v379 = vrot.slane %v378, 4
  %v380 = vadd.f32 %v378, %v379
  %v381 = vrot.slane %v380, 2
  %v382 = vadd.f32 %v380, %v381
  %v383 = vrot.slane %v382, 1
  %v384 = vadd.f32 %v382, %v383
  %vm385 = vcmask 1040384
  %v386 = vsel %vm385, %v375, %v384
  %387 = vst [vmem:[%s7] sm:$0x3] %v386
  // Predicated region
  $region26: #{generator_forward.5} parent=0 // pred_check
    _
  $region27: #{generator_forward.5} parent=0 // pred_check_branch
    %389 = sbr.rel (0) target = $region29
  $region28: #{generator_forward.5} parent=0 // pred_region
    _
  $region29: #{generator_forward.5} parent=0 // pred_fallthru
    _
  // Predicated region
  $region30: #{generator_forward.5} parent=0 // pred_check
    _
  $region31: #{generator_forward.5} parent=0 // pred_check_branch
    %391 = sbr.rel (0) target = $region33
  $region32: #{generator_forward.5} parent=0 // pred_region
    _
  $region33: #{generator_forward.5} parent=0 // pred_fallthru
    _
  // Predicated region
  $region34: #{generator_forward.5} parent=0 // pred_check
    _
  $region35: #{generator_forward.5} parent=0 // pred_check_branch
    %393 = sbr.rel (0) target = $region37
  $region36: #{generator_forward.5} parent=0 // pred_region
    _
  $region37: #{generator_forward.5} parent=0 // pred_fallthru
    _
  // Predicated region
  $region38: #{generator_forward.5} parent=0 // pred_check
    _
  $region39: #{generator_forward.5} parent=0 // pred_check_branch
    %395 = sbr.rel (0) target = $region41
  $region40: #{generator_forward.5} parent=0 // pred_region
    _
  $region41: #{generator_forward.5} parent=0 // pred_fallthru
    _

// kernel: generator_forward.6
$region0: #{generator_forward.6}
  #allocation0 [shape = 'u32[]', space=smem, size = 0x4, offset = 0x4, fixed_abs, tag = 'smem constant byte address 0x4 - core index']
  #allocation1 [shape = 'u32[144,128]{1,0:T(1,128)}', space=vmem, size = 0x12000, scoped, tag = 'internal scratch']
  %s0 = inlined_call_operand.vmem [shape: bf16[16,128], index: 0, kind: input, shape index: {}]
  %s1 = inlined_call_operand.vmem [shape: bf16[16,128], index: 1, kind: input, shape index: {}]
  %s2 = inlined_call_operand.vmem [shape: bf16[16,128], index: 2, kind: input, shape index: {}]
  %s3 = inlined_call_operand.vmem [shape: bf16[16,128], index: 3, kind: input, shape index: {}]
  %s4 = inlined_call_operand.vmem [shape: bf16[128,128], index: 4, kind: input, shape index: {}]
  %s5 = inlined_call_operand.vmem [shape: bf16[128,128], index: 5, kind: input, shape index: {}]
  %s6 = inlined_call_operand.vmem [shape: bf16[128,128], index: 6, kind: input, shape index: {}]
  %s7 = inlined_call_operand.vmem [shape: bf16[128,128], index: 7, kind: input, shape index: {}]
  %s8 = inlined_call_operand.vmem [shape: f32[16,128], index: 8, kind: output, shape index: {0}]
  %s9 = inlined_call_operand.vmem [shape: f32[1,2,128], index: 9, kind: output, shape index: {1}]
  %10 = xla_tuple %s8, %s9
  %s11 = sld [smem:[#allocation0]]
  $region50: #{generator_forward.6} parent=0
    _
  %s13 = ssub.s32 1, %s11
  %s14 = scalar_select 0, %s13, %s11
  // Predicated region
  $region2: #{generator_forward.6} parent=0 // pred_check
    _
  $region3: #{generator_forward.6} parent=0 // pred_check_branch
    %16 = sbr.rel (0) target = $region5
  $region4: #{generator_forward.6} parent=0 // pred_region
    _
  $region5: #{generator_forward.6} parent=0 // pred_fallthru
    _
  // Predicated region
  $region6: #{generator_forward.6} parent=0 // pred_check
    _
  $region7: #{generator_forward.6} parent=0 // pred_check_branch
    %18 = sbr.rel (0) target = $region9
  $region8: #{generator_forward.6} parent=0 // pred_region
    _
  $region9: #{generator_forward.6} parent=0 // pred_fallthru
    _
  // Predicated region
  $region10: #{generator_forward.6} parent=0 // pred_check
    _
  $region11: #{generator_forward.6} parent=0 // pred_check_branch
    %20 = sbr.rel (0) target = $region13
  $region12: #{generator_forward.6} parent=0 // pred_region
    _
  $region13: #{generator_forward.6} parent=0 // pred_fallthru
    _
  // Predicated region
  $region14: #{generator_forward.6} parent=0 // pred_check
    _
  $region15: #{generator_forward.6} parent=0 // pred_check_branch
    %22 = sbr.rel (0) target = $region17
  $region16: #{generator_forward.6} parent=0 // pred_region
    _
  $region17: #{generator_forward.6} parent=0 // pred_fallthru
    _
  // Predicated region
  $region18: #{generator_forward.6} parent=0 // pred_check
    _
  $region19: #{generator_forward.6} parent=0 // pred_check_branch
    %24 = sbr.rel (0) target = $region21
  $region20: #{generator_forward.6} parent=0 // pred_region
    _
  $region21: #{generator_forward.6} parent=0 // pred_fallthru
    _
  // Predicated region
  $region22: #{generator_forward.6} parent=0 // pred_check
    _
  $region23: #{generator_forward.6} parent=0 // pred_check_branch
    %26 = sbr.rel (0) target = $region25
  $region24: #{generator_forward.6} parent=0 // pred_region
    _
  $region25: #{generator_forward.6} parent=0 // pred_fallthru
    _
  // Predicated region
  $region26: #{generator_forward.6} parent=0 // pred_check
    _
  $region27: #{generator_forward.6} parent=0 // pred_check_branch
    %28 = sbr.rel (0) target = $region29
  $region28: #{generator_forward.6} parent=0 // pred_region
    _
  $region29: #{generator_forward.6} parent=0 // pred_fallthru
    _
  // Predicated region
  $region30: #{generator_forward.6} parent=0 // pred_check
    _
  $region31: #{generator_forward.6} parent=0 // pred_check_branch
    %30 = sbr.rel (0) target = $region33
  $region32: #{generator_forward.6} parent=0 // pred_region
    _
  $region33: #{generator_forward.6} parent=0 // pred_fallthru
    _
  %v32 = vld [vmem:[%s0] sm:$0xf]
  %v33 = vld [vmem:[%s0 + $0x4] sm:$0xf]
  %v34 = vld [vmem:[%s4] sm:$0xf]
  %v35 = vld [vmem:[%s4 + $0x4] sm:$0xf]
  %v36 = vld [vmem:[%s4 + $0x8] sm:$0xf]
  %v37 = vld [vmem:[%s4 + $0xc] sm:$0xf]
  %v38 = vld [vmem:[%s4 + $0x10] sm:$0xf]
  %v39 = vld [vmem:[%s4 + $0x14] sm:$0xf]
  %v40 = vld [vmem:[%s4 + $0x18] sm:$0xf]
  %v41 = vld [vmem:[%s4 + $0x1c] sm:$0xf]
  %v42 = vld [vmem:[%s4 + $0x20] sm:$0xf]
  %v43 = vld [vmem:[%s4 + $0x24] sm:$0xf]
  %v44 = vld [vmem:[%s4 + $0x28] sm:$0xf]
  %v45 = vld [vmem:[%s4 + $0x2c] sm:$0xf]
  %v46 = vld [vmem:[%s4 + $0x30] sm:$0xf]
  %v47 = vld [vmem:[%s4 + $0x34] sm:$0xf]
  %v48 = vld [vmem:[%s4 + $0x38] sm:$0xf]
  %v49 = vld [vmem:[%s4 + $0x3c] sm:$0xf]
  %v50 = vld [vmem:[%s1] sm:$0xf]
  %v51 = vld [vmem:[%s1 + $0x4] sm:$0xf]
  %v52 = vld [vmem:[%s5] sm:$0xf]
  %v53 = vld [vmem:[%s5 + $0x4] sm:$0xf]
  %v54 = vld [vmem:[%s5 + $0x8] sm:$0xf]
  %v55 = vld [vmem:[%s5 + $0xc] sm:$0xf]
  %v56 = vld [vmem:[%s5 + $0x10] sm:$0xf]
  %v57 = vld [vmem:[%s5 + $0x14] sm:$0xf]
  %v58 = vld [vmem:[%s5 + $0x18] sm:$0xf]
  %v59 = vld [vmem:[%s5 + $0x1c] sm:$0xf]
  %v60 = vld [vmem:[%s5 + $0x20] sm:$0xf]
  %v61 = vld [vmem:[%s5 + $0x24] sm:$0xf]
  %v62 = vld [vmem:[%s5 + $0x28] sm:$0xf]
  %v63 = vld [vmem:[%s5 + $0x2c] sm:$0xf]
  %v64 = vld [vmem:[%s5 + $0x30] sm:$0xf]
  %v65 = vld [vmem:[%s5 + $0x34] sm:$0xf]
  %v66 = vld [vmem:[%s5 + $0x38] sm:$0xf]
  %v67 = vld [vmem:[%s5 + $0x3c] sm:$0xf]
  %v70 = vunpack.c.l.b16 %v50
  %v71 = vunpack.c.l.b16 %v51
  %v72 = vpack.c.b16 %v71, %v70
  %v90 = vunpack.c.l.b16 %v52
  %v91 = vunpack.c.l.b16 %v53
  %v92 = vunpack.c.l.b16 %v54
  %v93 = vunpack.c.l.b16 %v55
  %v94 = vunpack.c.l.b16 %v56
  %v95 = vunpack.c.l.b16 %v57
  %v96 = vunpack.c.l.b16 %v58
  %v97 = vunpack.c.l.b16 %v59
  %v98 = vunpack.c.l.b16 %v60
  %v99 = vunpack.c.l.b16 %v61
  %v100 = vunpack.c.l.b16 %v62
  %v101 = vunpack.c.l.b16 %v63
  %v102 = vunpack.c.l.b16 %v64
  %v103 = vunpack.c.l.b16 %v65
  %v104 = vunpack.c.l.b16 %v66
  %v105 = vunpack.c.l.b16 %v67
  %v106 = vpack.c.b16 %v91, %v90
  %v107 = vpack.c.b16 %v93, %v92
  %v108 = vpack.c.b16 %v95, %v94
  %v109 = vpack.c.b16 %v97, %v96
  %v110 = vpack.c.b16 %v99, %v98
  %v111 = vpack.c.b16 %v101, %v100
  %v112 = vpack.c.b16 %v103, %v102
  %v113 = vpack.c.b16 %v105, %v104
  %122 = vmatprep.subr.bf16.mxu0 0
  %123 = vmatpush1.bf16.msra.mxu0 %v113
  %124 = vmatprep.subr.bf16.mxu0 0
  %125 = vmatpush1.bf16.msra.mxu0 %v112
  %126 = vmatprep.subr.bf16.mxu0 0
  %127 = vmatpush1.bf16.msra.mxu0 %v111
  %128 = vmatprep.subr.bf16.mxu0 0
  %129 = vmatpush1.bf16.msra.mxu0 %v110
  %130 = vmatprep.subr.bf16.mxu0 0
  %131 = vmatpush1.bf16.msra.mxu0 %v109
  %132 = vmatprep.subr.bf16.mxu0 0
  %133 = vmatpush1.bf16.msra.mxu0 %v108
  %134 = vmatprep.subr.bf16.mxu0 0
  %135 = vmatpush1.bf16.msra.mxu0 %v107
  %136 = vmatprep.subr.bf16.mxu0 0
  %137 = vmatpush1.bf16.msra.mxu0 %v106
  %138 = vmatprep.subr.bf16.mxu0 0
  %139 = vmatpush2.bf16.msra.mxu0 0
  %140 = vmatprep.subr.bf16.mxu0 0
  %141 = vmatpush2.bf16.msra.mxu0 0
  %142 = vmatprep.subr.bf16.mxu0 0
  %143 = vmatpush2.bf16.msra.mxu0 0
  %144 = vmatprep.subr.bf16.mxu0 0
  %145 = vmatpush2.bf16.msra.mxu0 0
  %146 = vmatprep.subr.bf16.mxu0 0
  %147 = vmatpush2.bf16.msra.mxu0 0
  %148 = vmatprep.subr.bf16.mxu0 0
  %149 = vmatpush2.bf16.msra.mxu0 0
  %150 = vmatprep.subr.bf16.mxu0 0
  %151 = vmatpush2.bf16.msra.mxu0 0
  %152 = vmatprep.subr.bf16.mxu0 0
  %153 = vmatpush2.bf16.msra.mxu0 0
  %154 = vmatprep.mubr.bf16.mxu0 0
  %155 = vmatmul.mubr.bf16.gmra.mxu0 %v72
  %v156 = vpop.f32.mrf.mxu0
  %v157 = vadd.f32 0.0, %v156
  %v158 = vpop.f32.mrf.mxu0
  %v159 = vpop.f32.mrf.mxu0
  %v160 = vadd.f32 0.0, %v159
  %v161 = vpop.f32.mrf.mxu0
  %162 = vdwg.mxu0
  %v165 = vunpack.c.l.b16 %v32
  %v166 = vunpack.c.l.b16 %v33
  %v167 = vpack.c.b16 %v166, %v165
  %v185 = vunpack.c.l.b16 %v34
  %v186 = vunpack.c.l.b16 %v35
  %v187 = vunpack.c.l.b16 %v36
  %v188 = vunpack.c.l.b16 %v37
  %v189 = vunpack.c.l.b16 %v38
  %v190 = vunpack.c.l.b16 %v39
  %v191 = vunpack.c.l.b16 %v40
  %v192 = vunpack.c.l.b16 %v41
  %v193 = vunpack.c.l.b16 %v42
  %v194 = vunpack.c.l.b16 %v43
  %v195 = vunpack.c.l.b16 %v44
  %v196 = vunpack.c.l.b16 %v45
  %v197 = vunpack.c.l.b16 %v46
  %v198 = vunpack.c.l.b16 %v47
  %v199 = vunpack.c.l.b16 %v48
  %v200 = vunpack.c.l.b16 %v49
  %v201 = vpack.c.b16 %v186, %v185
  %v202 = vpack.c.b16 %v188, %v187
  %v203 = vpack.c.b16 %v190, %v189
  %v204 = vpack.c.b16 %v192, %v191
  %v205 = vpack.c.b16 %v194, %v193
  %v206 = vpack.c.b16 %v196, %v195
  %v207 = vpack.c.b16 %v198, %v197
  %v208 = vpack.c.b16 %v200, %v199
  %217 = vmatprep.subr.bf16.mxu0 0
  %218 = vmatpush1.bf16.msra.mxu0 %v208
  %219 = vmatprep.subr.bf16.mxu0 0
  %220 = vmatpush1.bf16.msra.mxu0 %v207
  %221 = vmatprep.subr.bf16.mxu0 0
  %222 = vmatpush1.bf16.msra.mxu0 %v206
  %223 = vmatprep.subr.bf16.mxu0 0
  %224 = vmatpush1.bf16.msra.mxu0 %v205
  %225 = vmatprep.subr.bf16.mxu0 0
  %226 = vmatpush1.bf16.msra.mxu0 %v204
  %227 = vmatprep.subr.bf16.mxu0 0
  %228 = vmatpush1.bf16.msra.mxu0 %v203
  %229 = vmatprep.subr.bf16.mxu0 0
  %230 = vmatpush1.bf16.msra.mxu0 %v202
  %231 = vmatprep.subr.bf16.mxu0 0
  %232 = vmatpush1.bf16.msra.mxu0 %v201
  %233 = vmatprep.subr.bf16.mxu0 0
  %234 = vmatpush2.bf16.msra.mxu0 0
  %235 = vmatprep.subr.bf16.mxu0 0
  %236 = vmatpush2.bf16.msra.mxu0 0
  %237 = vmatprep.subr.bf16.mxu0 0
  %238 = vmatpush2.bf16.msra.mxu0 0
  %239 = vmatprep.subr.bf16.mxu0 0
  %240 = vmatpush2.bf16.msra.mxu0 0
  %241 = vmatprep.subr.bf16.mxu0 0
  %242 = vmatpush2.bf16.msra.mxu0 0
  %243 = vmatprep.subr.bf16.mxu0 0
  %244 = vmatpush2.bf16.msra.mxu0 0
  %245 = vmatprep.subr.bf16.mxu0 0
  %246 = vmatpush2.bf16.msra.mxu0 0
  %247 = vmatprep.subr.bf16.mxu0 0
  %248 = vmatpush2.bf16.msra.mxu0 0
  %249 = vmatprep.mubr.bf16.mxu0 0
  %250 = vmatmul.mubr.bf16.gmra.mxu0 %v167
  %v251 = vpop.f32.mrf.mxu0
  %v252 = vadd.f32 %v157, %v251
  %v253 = vpop.f32.mrf.mxu0
  %v254 = vpop.f32.mrf.mxu0
  %v255 = vadd.f32 %v160, %v254
  %v256 = vpop.f32.mrf.mxu0
  %257 = vdwg.mxu0
  %v258 = vld [vmem:[%s2] sm:$0xf]
  %v259 = vld [vmem:[%s2 + $0x4] sm:$0xf]
  %v260 = vld [vmem:[%s6] sm:$0xf]
  %v261 = vld [vmem:[%s6 + $0x4] sm:$0xf]
  %v262 = vld [vmem:[%s6 + $0x8] sm:$0xf]
  %v263 = vld [vmem:[%s6 + $0xc] sm:$0xf]
  %v264 = vld [vmem:[%s6 + $0x10] sm:$0xf]
  %v265 = vld [vmem:[%s6 + $0x14] sm:$0xf]
  %v266 = vld [vmem:[%s6 + $0x18] sm:$0xf]
  %v267 = vld [vmem:[%s6 + $0x1c] sm:$0xf]
  %v268 = vld [vmem:[%s6 + $0x20] sm:$0xf]
  %v269 = vld [vmem:[%s6 + $0x24] sm:$0xf]
  %v270 = vld [vmem:[%s6 + $0x28] sm:$0xf]
  %v271 = vld [vmem:[%s6 + $0x2c] sm:$0xf]
  %v272 = vld [vmem:[%s6 + $0x30] sm:$0xf]
  %v273 = vld [vmem:[%s6 + $0x34] sm:$0xf]
  %v274 = vld [vmem:[%s6 + $0x38] sm:$0xf]
  %v275 = vld [vmem:[%s6 + $0x3c] sm:$0xf]
  %v278 = vunpack.c.l.b16 %v258
  %v279 = vunpack.c.l.b16 %v259
  %v280 = vpack.c.b16 %v279, %v278
  %v298 = vunpack.c.l.b16 %v260
  %v299 = vunpack.c.l.b16 %v261
  %v300 = vunpack.c.l.b16 %v262
  %v301 = vunpack.c.l.b16 %v263
  %v302 = vunpack.c.l.b16 %v264
  %v303 = vunpack.c.l.b16 %v265
  %v304 = vunpack.c.l.b16 %v266
  %v305 = vunpack.c.l.b16 %v267
  %v306 = vunpack.c.l.b16 %v268
  %v307 = vunpack.c.l.b16 %v269
  %v308 = vunpack.c.l.b16 %v270
  %v309 = vunpack.c.l.b16 %v271
  %v310 = vunpack.c.l.b16 %v272
  %v311 = vunpack.c.l.b16 %v273
  %v312 = vunpack.c.l.b16 %v274
  %v313 = vunpack.c.l.b16 %v275
  %v314 = vpack.c.b16 %v299, %v298
  %v315 = vpack.c.b16 %v301, %v300
  %v316 = vpack.c.b16 %v303, %v302
  %v317 = vpack.c.b16 %v305, %v304
  %v318 = vpack.c.b16 %v307, %v306
  %v319 = vpack.c.b16 %v309, %v308
  %v320 = vpack.c.b16 %v311, %v310
  %v321 = vpack.c.b16 %v313, %v312
  %330 = vmatprep.subr.bf16.mxu0 0
  %331 = vmatpush1.bf16.msra.mxu0 %v321
  %332 = vmatprep.subr.bf16.mxu0 0
  %333 = vmatpush1.bf16.msra.mxu0 %v320
  %334 = vmatprep.subr.bf16.mxu0 0
  %335 = vmatpush1.bf16.msra.mxu0 %v319
  %336 = vmatprep.subr.bf16.mxu0 0
  %337 = vmatpush1.bf16.msra.mxu0 %v318
  %338 = vmatprep.subr.bf16.mxu0 0
  %339 = vmatpush1.bf16.msra.mxu0 %v317
  %340 = vmatprep.subr.bf16.mxu0 0
  %341 = vmatpush1.bf16.msra.mxu0 %v316
  %342 = vmatprep.subr.bf16.mxu0 0
  %343 = vmatpush1.bf16.msra.mxu0 %v315
  %344 = vmatprep.subr.bf16.mxu0 0
  %345 = vmatpush1.bf16.msra.mxu0 %v314
  %346 = vmatprep.subr.bf16.mxu0 0
  %347 = vmatpush2.bf16.msra.mxu0 0
  %348 = vmatprep.subr.bf16.mxu0 0
  %349 = vmatpush2.bf16.msra.mxu0 0
  %350 = vmatprep.subr.bf16.mxu0 0
  %351 = vmatpush2.bf16.msra.mxu0 0
  %352 = vmatprep.subr.bf16.mxu0 0
  %353 = vmatpush2.bf16.msra.mxu0 0
  %354 = vmatprep.subr.bf16.mxu0 0
  %355 = vmatpush2.bf16.msra.mxu0 0
  %356 = vmatprep.subr.bf16.mxu0 0
  %357 = vmatpush2.bf16.msra.mxu0 0
  %358 = vmatprep.subr.bf16.mxu0 0
  %359 = vmatpush2.bf16.msra.mxu0 0
  %360 = vmatprep.subr.bf16.mxu0 0
  %361 = vmatpush2.bf16.msra.mxu0 0
  %362 = vmatprep.mubr.bf16.mxu0 0
  %363 = vmatmul.mubr.bf16.gmra.mxu0 %v280
  %v364 = vpop.f32.mrf.mxu0
  %v365 = vadd.f32 0.0, %v364
  %v366 = vpop.f32.mrf.mxu0
  %v367 = vpop.f32.mrf.mxu0
  %v368 = vadd.f32 0.0, %v367
  %v369 = vpop.f32.mrf.mxu0
  %370 = vdwg.mxu0
  %v371 = vadd.f32 %v252, %v365
  %v372 = vadd.f32 %v255, %v368
  %v373 = vld [vmem:[%s3] sm:$0xf]
  %v374 = vld [vmem:[%s3 + $0x4] sm:$0xf]
  %v375 = vld [vmem:[%s7] sm:$0xf]
  %v376 = vld [vmem:[%s7 + $0x4] sm:$0xf]
  %v377 = vld [vmem:[%s7 + $0x8] sm:$0xf]
  %v378 = vld [vmem:[%s7 + $0xc] sm:$0xf]
  %v379 = vld [vmem:[%s7 + $0x10] sm:$0xf]
  %v380 = vld [vmem:[%s7 + $0x14] sm:$0xf]
  %v381 = vld [vmem:[%s7 + $0x18] sm:$0xf]
  %v382 = vld [vmem:[%s7 + $0x1c] sm:$0xf]
  %v383 = vld [vmem:[%s7 + $0x20] sm:$0xf]
  %v384 = vld [vmem:[%s7 + $0x24] sm:$0xf]
  %v385 = vld [vmem:[%s7 + $0x28] sm:$0xf]
  %v386 = vld [vmem:[%s7 + $0x2c] sm:$0xf]
  %v387 = vld [vmem:[%s7 + $0x30] sm:$0xf]
  %v388 = vld [vmem:[%s7 + $0x34] sm:$0xf]
  %v389 = vld [vmem:[%s7 + $0x38] sm:$0xf]
  %v390 = vld [vmem:[%s7 + $0x3c] sm:$0xf]
  %v393 = vunpack.c.l.b16 %v373
  %v394 = vunpack.c.l.b16 %v374
  %v395 = vpack.c.b16 %v394, %v393
  %v413 = vunpack.c.l.b16 %v375
  %v414 = vunpack.c.l.b16 %v376
  %v415 = vunpack.c.l.b16 %v377
  %v416 = vunpack.c.l.b16 %v378
  %v417 = vunpack.c.l.b16 %v379
  %v418 = vunpack.c.l.b16 %v380
  %v419 = vunpack.c.l.b16 %v381
  %v420 = vunpack.c.l.b16 %v382
  %v421 = vunpack.c.l.b16 %v383
  %v422 = vunpack.c.l.b16 %v384
  %v423 = vunpack.c.l.b16 %v385
  %v424 = vunpack.c.l.b16 %v386
  %v425 = vunpack.c.l.b16 %v387
  %v426 = vunpack.c.l.b16 %v388
  %v427 = vunpack.c.l.b16 %v389
  %v428 = vunpack.c.l.b16 %v390
  %v429 = vpack.c.b16 %v414, %v413
  %v430 = vpack.c.b16 %v416, %v415
  %v431 = vpack.c.b16 %v418, %v417
  %v432 = vpack.c.b16 %v420, %v419
  %v433 = vpack.c.b16 %v422, %v421
  %v434 = vpack.c.b16 %v424, %v423
  %v435 = vpack.c.b16 %v426, %v425
  %v436 = vpack.c.b16 %v428, %v427
  %445 = vmatprep.subr.bf16.mxu0 0
  %446 = vmatpush1.bf16.msra.mxu0 %v436
  %447 = vmatprep.subr.bf16.mxu0 0
  %448 = vmatpush1.bf16.msra.mxu0 %v435
  %449 = vmatprep.subr.bf16.mxu0 0
  %450 = vmatpush1.bf16.msra.mxu0 %v434
  %451 = vmatprep.subr.bf16.mxu0 0
  %452 = vmatpush1.bf16.msra.mxu0 %v433
  %453 = vmatprep.subr.bf16.mxu0 0
  %454 = vmatpush1.bf16.msra.mxu0 %v432
  %455 = vmatprep.subr.bf16.mxu0 0
  %456 = vmatpush1.bf16.msra.mxu0 %v431
  %457 = vmatprep.subr.bf16.mxu0 0
  %458 = vmatpush1.bf16.msra.mxu0 %v430
  %459 = vmatprep.subr.bf16.mxu0 0
  %460 = vmatpush1.bf16.msra.mxu0 %v429
  %461 = vmatprep.subr.bf16.mxu0 0
  %462 = vmatpush2.bf16.msra.mxu0 0
  %463 = vmatprep.subr.bf16.mxu0 0
  %464 = vmatpush2.bf16.msra.mxu0 0
  %465 = vmatprep.subr.bf16.mxu0 0
  %466 = vmatpush2.bf16.msra.mxu0 0
  %467 = vmatprep.subr.bf16.mxu0 0
  %468 = vmatpush2.bf16.msra.mxu0 0
  %469 = vmatprep.subr.bf16.mxu0 0
  %470 = vmatpush2.bf16.msra.mxu0 0
  %471 = vmatprep.subr.bf16.mxu0 0
  %472 = vmatpush2.bf16.msra.mxu0 0
  %473 = vmatprep.subr.bf16.mxu0 0
  %474 = vmatpush2.bf16.msra.mxu0 0
  %475 = vmatprep.subr.bf16.mxu0 0
  %476 = vmatpush2.bf16.msra.mxu0 0
  %477 = vmatprep.mubr.bf16.mxu0 0
  %478 = vmatmul.mubr.bf16.gmra.mxu0 %v395
  %v479 = vpop.f32.mrf.mxu0
  %v480 = vadd.f32 0.0, %v479
  %v481 = vpop.f32.mrf.mxu0
  %v482 = vpop.f32.mrf.mxu0
  %v483 = vadd.f32 0.0, %v482
  %v484 = vpop.f32.mrf.mxu0
  %485 = vdwg.mxu0
  %v486 = vadd.f32 %v371, %v480
  %v487 = vadd.f32 %v372, %v483
  %488 = vst [vmem:[%s8] sm:$0xff] %v486
  %489 = vst [vmem:[%s8 + $0x8] sm:$0xff] %v487
  %v490 = vadd.f32 %v486, %v487
  %v491 = vrot.slane %v490, 4
  %v492 = vadd.f32 %v490, %v491
  %v493 = vrot.slane %v492, 2
  %v494 = vadd.f32 %v492, %v493
  %v495 = vrot.slane %v494, 1
  %v496 = vadd.f32 %v494, %v495
  %v497 = vmul.f32 %v486, %v486
  %v498 = vmul.f32 %v487, %v487
  %v499 = vadd.f32 %v497, %v498
  %v500 = vrot.slane %v499, 4
  %v501 = vadd.f32 %v499, %v500
  %v502 = vrot.slane %v501, 2
  %v503 = vadd.f32 %v501, %v502
  %v504 = vrot.slane %v503, 1
  %v505 = vadd.f32 %v503, %v504
  %vm506 = vcmask 1040384
  %v507 = vsel %vm506, %v496, %v505
  %508 = vst [vmem:[%s9] sm:$0x3] %v507
  // Predicated region
  $region34: #{generator_forward.6} parent=0 // pred_check
    _
  $region35: #{generator_forward.6} parent=0 // pred_check_branch
    %510 = sbr.rel (0) target = $region37
  $region36: #{generator_forward.6} parent=0 // pred_region
    _
  $region37: #{generator_forward.6} parent=0 // pred_fallthru
    _
  // Predicated region
  $region38: #{generator_forward.6} parent=0 // pred_check
    _
  $region39: #{generator_forward.6} parent=0 // pred_check_branch
    %512 = sbr.rel (0) target = $region41
  $region40: #{generator_forward.6} parent=0 // pred_region
    _
  $region41: #{generator_forward.6} parent=0 // pred_fallthru
    _
  // Predicated region
  $region42: #{generator_forward.6} parent=0 // pred_check
    _
  $region43: #{generator_forward.6} parent=0 // pred_check_branch
    %514 = sbr.rel (0) target = $region45
  $region44: #{generator_forward.6} parent=0 // pred_region
    _
  $region45: #{generator_forward.6} parent=0 // pred_fallthru
    _
  // Predicated region
  $region46: #{generator_forward.6} parent=0 // pred_check
    _
  $region47: #{generator_forward.6} parent=0 // pred_check_branch
    %516 = sbr.rel (0) target = $region49
  $region48: #{generator_forward.6} parent=0 // pred_region
    _
  $region49: #{generator_forward.6} parent=0 // pred_fallthru
    _

// kernel: generator_forward.7
$region0: #{generator_forward.7}
  #allocation0 [shape = 'u32[]', space=smem, size = 0x4, offset = 0x4, fixed_abs, tag = 'smem constant byte address 0x4 - core index']
  #allocation1 [shape = 'u32[144,128]{1,0:T(1,128)}', space=vmem, size = 0x12000, scoped, tag = 'internal scratch']
  %s0 = inlined_call_operand.vmem [shape: bf16[16,128], index: 0, kind: input, shape index: {}]
  %s1 = inlined_call_operand.vmem [shape: bf16[16,128], index: 1, kind: input, shape index: {}]
  %s2 = inlined_call_operand.vmem [shape: bf16[16,128], index: 2, kind: input, shape index: {}]
  %s3 = inlined_call_operand.vmem [shape: bf16[16,128], index: 3, kind: input, shape index: {}]
  %s4 = inlined_call_operand.vmem [shape: bf16[16,128], index: 4, kind: input, shape index: {}]
  %s5 = inlined_call_operand.vmem [shape: bf16[128,128], index: 5, kind: input, shape index: {}]
  %s6 = inlined_call_operand.vmem [shape: bf16[128,128], index: 6, kind: input, shape index: {}]
  %s7 = inlined_call_operand.vmem [shape: bf16[128,128], index: 7, kind: input, shape index: {}]
  %s8 = inlined_call_operand.vmem [shape: bf16[128,128], index: 8, kind: input, shape index: {}]
  %s9 = inlined_call_operand.vmem [shape: bf16[128,128], index: 9, kind: input, shape index: {}]
  %s10 = inlined_call_operand.vmem [shape: f32[1,128], index: 10, kind: input, shape index: {}]
  %s11 = inlined_call_operand.vmem [shape: f32[16,128], index: 11, kind: output, shape index: {}]
  %s12 = sld [smem:[#allocation0]]
  $region54: #{generator_forward.7} parent=0
    _
  %s14 = ssub.s32 1, %s12
  %s15 = scalar_select 0, %s14, %s12
  // Predicated region
  $region2: #{generator_forward.7} parent=0 // pred_check
    _
  $region3: #{generator_forward.7} parent=0 // pred_check_branch
    %17 = sbr.rel (0) target = $region5
  $region4: #{generator_forward.7} parent=0 // pred_region
    _
  $region5: #{generator_forward.7} parent=0 // pred_fallthru
    _
  // Predicated region
  $region6: #{generator_forward.7} parent=0 // pred_check
    _
  $region7: #{generator_forward.7} parent=0 // pred_check_branch
    %19 = sbr.rel (0) target = $region9
  $region8: #{generator_forward.7} parent=0 // pred_region
    _
  $region9: #{generator_forward.7} parent=0 // pred_fallthru
    _
  // Predicated region
  $region10: #{generator_forward.7} parent=0 // pred_check
    _
  $region11: #{generator_forward.7} parent=0 // pred_check_branch
    %21 = sbr.rel (0) target = $region13
  $region12: #{generator_forward.7} parent=0 // pred_region
    _
  $region13: #{generator_forward.7} parent=0 // pred_fallthru
    _
  // Predicated region
  $region14: #{generator_forward.7} parent=0 // pred_check
    _
  $region15: #{generator_forward.7} parent=0 // pred_check_branch
    %23 = sbr.rel (0) target = $region17
  $region16: #{generator_forward.7} parent=0 // pred_region
    _
  $region17: #{generator_forward.7} parent=0 // pred_fallthru
    _
  // Predicated region
  $region18: #{generator_forward.7} parent=0 // pred_check
    _
  $region19: #{generator_forward.7} parent=0 // pred_check_branch
    %25 = sbr.rel (0) target = $region21
  $region20: #{generator_forward.7} parent=0 // pred_region
    _
  $region21: #{generator_forward.7} parent=0 // pred_fallthru
    _
  // Predicated region
  $region22: #{generator_forward.7} parent=0 // pred_check
    _
  $region23: #{generator_forward.7} parent=0 // pred_check_branch
    %27 = sbr.rel (0) target = $region25
  $region24: #{generator_forward.7} parent=0 // pred_region
    _
  $region25: #{generator_forward.7} parent=0 // pred_fallthru
    _
  // Predicated region
  $region26: #{generator_forward.7} parent=0 // pred_check
    _
  $region27: #{generator_forward.7} parent=0 // pred_check_branch
    %29 = sbr.rel (0) target = $region29
  $region28: #{generator_forward.7} parent=0 // pred_region
    _
  $region29: #{generator_forward.7} parent=0 // pred_fallthru
    _
  // Predicated region
  $region30: #{generator_forward.7} parent=0 // pred_check
    _
  $region31: #{generator_forward.7} parent=0 // pred_check_branch
    %31 = sbr.rel (0) target = $region33
  $region32: #{generator_forward.7} parent=0 // pred_region
    _
  $region33: #{generator_forward.7} parent=0 // pred_fallthru
    _
  // Predicated region
  $region34: #{generator_forward.7} parent=0 // pred_check
    _
  $region35: #{generator_forward.7} parent=0 // pred_check_branch
    %33 = sbr.rel (0) target = $region37
  $region36: #{generator_forward.7} parent=0 // pred_region
    _
  $region37: #{generator_forward.7} parent=0 // pred_fallthru
    _
  // Predicated region
  $region38: #{generator_forward.7} parent=0 // pred_check
    _
  $region39: #{generator_forward.7} parent=0 // pred_check_branch
    %35 = sbr.rel (0) target = $region41
  $region40: #{generator_forward.7} parent=0 // pred_region
    _
  $region41: #{generator_forward.7} parent=0 // pred_fallthru
    _
  // Predicated region
  $region42: #{generator_forward.7} parent=0 // pred_check
    _
  $region43: #{generator_forward.7} parent=0 // pred_check_branch
    %37 = sbr.rel (0) target = $region45
  $region44: #{generator_forward.7} parent=0 // pred_region
    _
  $region45: #{generator_forward.7} parent=0 // pred_fallthru
    _
  %v39 = vld [vmem:[%s0] sm:$0xf]
  %v40 = vld [vmem:[%s0 + $0x4] sm:$0xf]
  %v41 = vld [vmem:[%s5] sm:$0xf]
  %v42 = vld [vmem:[%s5 + $0x4] sm:$0xf]
  %v43 = vld [vmem:[%s5 + $0x8] sm:$0xf]
  %v44 = vld [vmem:[%s5 + $0xc] sm:$0xf]
  %v45 = vld [vmem:[%s5 + $0x10] sm:$0xf]
  %v46 = vld [vmem:[%s5 + $0x14] sm:$0xf]
  %v47 = vld [vmem:[%s5 + $0x18] sm:$0xf]
  %v48 = vld [vmem:[%s5 + $0x1c] sm:$0xf]
  %v49 = vld [vmem:[%s5 + $0x20] sm:$0xf]
  %v50 = vld [vmem:[%s5 + $0x24] sm:$0xf]
  %v51 = vld [vmem:[%s5 + $0x28] sm:$0xf]
  %v52 = vld [vmem:[%s5 + $0x2c] sm:$0xf]
  %v53 = vld [vmem:[%s5 + $0x30] sm:$0xf]
  %v54 = vld [vmem:[%s5 + $0x34] sm:$0xf]
  %v55 = vld [vmem:[%s5 + $0x38] sm:$0xf]
  %v56 = vld [vmem:[%s5 + $0x3c] sm:$0xf]
  %v57 = vld [vmem:[%s1] sm:$0xf]
  %v58 = vld [vmem:[%s1 + $0x4] sm:$0xf]
  %v59 = vld [vmem:[%s6] sm:$0xf]
  %v60 = vld [vmem:[%s6 + $0x4] sm:$0xf]
  %v61 = vld [vmem:[%s6 + $0x8] sm:$0xf]
  %v62 = vld [vmem:[%s6 + $0xc] sm:$0xf]
  %v63 = vld [vmem:[%s6 + $0x10] sm:$0xf]
  %v64 = vld [vmem:[%s6 + $0x14] sm:$0xf]
  %v65 = vld [vmem:[%s6 + $0x18] sm:$0xf]
  %v66 = vld [vmem:[%s6 + $0x1c] sm:$0xf]
  %v67 = vld [vmem:[%s6 + $0x20] sm:$0xf]
  %v68 = vld [vmem:[%s6 + $0x24] sm:$0xf]
  %v69 = vld [vmem:[%s6 + $0x28] sm:$0xf]
  %v70 = vld [vmem:[%s6 + $0x2c] sm:$0xf]
  %v71 = vld [vmem:[%s6 + $0x30] sm:$0xf]
  %v72 = vld [vmem:[%s6 + $0x34] sm:$0xf]
  %v73 = vld [vmem:[%s6 + $0x38] sm:$0xf]
  %v74 = vld [vmem:[%s6 + $0x3c] sm:$0xf]
  %v77 = vunpack.c.l.b16 %v57
  %v78 = vunpack.c.l.b16 %v58
  %v79 = vpack.c.b16 %v78, %v77
  %v97 = vunpack.c.l.b16 %v59
  %v98 = vunpack.c.l.b16 %v60
  %v99 = vunpack.c.l.b16 %v61
  %v100 = vunpack.c.l.b16 %v62
  %v101 = vunpack.c.l.b16 %v63
  %v102 = vunpack.c.l.b16 %v64
  %v103 = vunpack.c.l.b16 %v65
  %v104 = vunpack.c.l.b16 %v66
  %v105 = vunpack.c.l.b16 %v67
  %v106 = vunpack.c.l.b16 %v68
  %v107 = vunpack.c.l.b16 %v69
  %v108 = vunpack.c.l.b16 %v70
  %v109 = vunpack.c.l.b16 %v71
  %v110 = vunpack.c.l.b16 %v72
  %v111 = vunpack.c.l.b16 %v73
  %v112 = vunpack.c.l.b16 %v74
  %v113 = vpack.c.b16 %v98, %v97
  %v114 = vpack.c.b16 %v100, %v99
  %v115 = vpack.c.b16 %v102, %v101
  %v116 = vpack.c.b16 %v104, %v103
  %v117 = vpack.c.b16 %v106, %v105
  %v118 = vpack.c.b16 %v108, %v107
  %v119 = vpack.c.b16 %v110, %v109
  %v120 = vpack.c.b16 %v112, %v111
  %129 = vmatprep.subr.bf16.mxu0 0
  %130 = vmatpush1.bf16.msra.mxu0 %v120
  %131 = vmatprep.subr.bf16.mxu0 0
  %132 = vmatpush1.bf16.msra.mxu0 %v119
  %133 = vmatprep.subr.bf16.mxu0 0
  %134 = vmatpush1.bf16.msra.mxu0 %v118
  %135 = vmatprep.subr.bf16.mxu0 0
  %136 = vmatpush1.bf16.msra.mxu0 %v117
  %137 = vmatprep.subr.bf16.mxu0 0
  %138 = vmatpush1.bf16.msra.mxu0 %v116
  %139 = vmatprep.subr.bf16.mxu0 0
  %140 = vmatpush1.bf16.msra.mxu0 %v115
  %141 = vmatprep.subr.bf16.mxu0 0
  %142 = vmatpush1.bf16.msra.mxu0 %v114
  %143 = vmatprep.subr.bf16.mxu0 0
  %144 = vmatpush1.bf16.msra.mxu0 %v113
  %145 = vmatprep.subr.bf16.mxu0 0
  %146 = vmatpush2.bf16.msra.mxu0 0
  %147 = vmatprep.subr.bf16.mxu0 0
  %148 = vmatpush2.bf16.msra.mxu0 0
  %149 = vmatprep.subr.bf16.mxu0 0
  %150 = vmatpush2.bf16.msra.mxu0 0
  %151 = vmatprep.subr.bf16.mxu0 0
  %152 = vmatpush2.bf16.msra.mxu0 0
  %153 = vmatprep.subr.bf16.mxu0 0
  %154 = vmatpush2.bf16.msra.mxu0 0
  %155 = vmatprep.subr.bf16.mxu0 0
  %156 = vmatpush2.bf16.msra.mxu0 0
  %157 = vmatprep.subr.bf16.mxu0 0
  %158 = vmatpush2.bf16.msra.mxu0 0
  %159 = vmatprep.subr.bf16.mxu0 0
  %160 = vmatpush2.bf16.msra.mxu0 0
  %161 = vmatprep.mubr.bf16.mxu0 0
  %162 = vmatmul.mubr.bf16.gmra.mxu0 %v79
  %v163 = vpop.f32.mrf.mxu0
  %v164 = vadd.f32 0.0, %v163
  %v165 = vpop.f32.mrf.mxu0
  %v166 = vpop.f32.mrf.mxu0
  %v167 = vadd.f32 0.0, %v166
  %v168 = vpop.f32.mrf.mxu0
  %169 = vdwg.mxu0
  %v172 = vunpack.c.l.b16 %v39
  %v173 = vunpack.c.l.b16 %v40
  %v174 = vpack.c.b16 %v173, %v172
  %v192 = vunpack.c.l.b16 %v41
  %v193 = vunpack.c.l.b16 %v42
  %v194 = vunpack.c.l.b16 %v43
  %v195 = vunpack.c.l.b16 %v44
  %v196 = vunpack.c.l.b16 %v45
  %v197 = vunpack.c.l.b16 %v46
  %v198 = vunpack.c.l.b16 %v47
  %v199 = vunpack.c.l.b16 %v48
  %v200 = vunpack.c.l.b16 %v49
  %v201 = vunpack.c.l.b16 %v50
  %v202 = vunpack.c.l.b16 %v51
  %v203 = vunpack.c.l.b16 %v52
  %v204 = vunpack.c.l.b16 %v53
  %v205 = vunpack.c.l.b16 %v54
  %v206 = vunpack.c.l.b16 %v55
  %v207 = vunpack.c.l.b16 %v56
  %v208 = vpack.c.b16 %v193, %v192
  %v209 = vpack.c.b16 %v195, %v194
  %v210 = vpack.c.b16 %v197, %v196
  %v211 = vpack.c.b16 %v199, %v198
  %v212 = vpack.c.b16 %v201, %v200
  %v213 = vpack.c.b16 %v203, %v202
  %v214 = vpack.c.b16 %v205, %v204
  %v215 = vpack.c.b16 %v207, %v206
  %224 = vmatprep.subr.bf16.mxu0 0
  %225 = vmatpush1.bf16.msra.mxu0 %v215
  %226 = vmatprep.subr.bf16.mxu0 0
  %227 = vmatpush1.bf16.msra.mxu0 %v214
  %228 = vmatprep.subr.bf16.mxu0 0
  %229 = vmatpush1.bf16.msra.mxu0 %v213
  %230 = vmatprep.subr.bf16.mxu0 0
  %231 = vmatpush1.bf16.msra.mxu0 %v212
  %232 = vmatprep.subr.bf16.mxu0 0
  %233 = vmatpush1.bf16.msra.mxu0 %v211
  %234 = vmatprep.subr.bf16.mxu0 0
  %235 = vmatpush1.bf16.msra.mxu0 %v210
  %236 = vmatprep.subr.bf16.mxu0 0
  %237 = vmatpush1.bf16.msra.mxu0 %v209
  %238 = vmatprep.subr.bf16.mxu0 0
  %239 = vmatpush1.bf16.msra.mxu0 %v208
  %240 = vmatprep.subr.bf16.mxu0 0
  %241 = vmatpush2.bf16.msra.mxu0 0
  %242 = vmatprep.subr.bf16.mxu0 0
  %243 = vmatpush2.bf16.msra.mxu0 0
  %244 = vmatprep.subr.bf16.mxu0 0
  %245 = vmatpush2.bf16.msra.mxu0 0
  %246 = vmatprep.subr.bf16.mxu0 0
  %247 = vmatpush2.bf16.msra.mxu0 0
  %248 = vmatprep.subr.bf16.mxu0 0
  %249 = vmatpush2.bf16.msra.mxu0 0
  %250 = vmatprep.subr.bf16.mxu0 0
  %251 = vmatpush2.bf16.msra.mxu0 0
  %252 = vmatprep.subr.bf16.mxu0 0
  %253 = vmatpush2.bf16.msra.mxu0 0
  %254 = vmatprep.subr.bf16.mxu0 0
  %255 = vmatpush2.bf16.msra.mxu0 0
  %256 = vmatprep.mubr.bf16.mxu0 0
  %257 = vmatmul.mubr.bf16.gmra.mxu0 %v174
  %v258 = vpop.f32.mrf.mxu0
  %v259 = vadd.f32 %v164, %v258
  %v260 = vpop.f32.mrf.mxu0
  %v261 = vpop.f32.mrf.mxu0
  %v262 = vadd.f32 %v167, %v261
  %v263 = vpop.f32.mrf.mxu0
  %264 = vdwg.mxu0
  %v265 = vld [vmem:[%s2] sm:$0xf]
  %v266 = vld [vmem:[%s2 + $0x4] sm:$0xf]
  %v267 = vld [vmem:[%s7] sm:$0xf]
  %v268 = vld [vmem:[%s7 + $0x4] sm:$0xf]
  %v269 = vld [vmem:[%s7 + $0x8] sm:$0xf]
  %v270 = vld [vmem:[%s7 + $0xc] sm:$0xf]
  %v271 = vld [vmem:[%s7 + $0x10] sm:$0xf]
  %v272 = vld [vmem:[%s7 + $0x14] sm:$0xf]
  %v273 = vld [vmem:[%s7 + $0x18] sm:$0xf]
  %v274 = vld [vmem:[%s7 + $0x1c] sm:$0xf]
  %v275 = vld [vmem:[%s7 + $0x20] sm:$0xf]
  %v276 = vld [vmem:[%s7 + $0x24] sm:$0xf]
  %v277 = vld [vmem:[%s7 + $0x28] sm:$0xf]
  %v278 = vld [vmem:[%s7 + $0x2c] sm:$0xf]
  %v279 = vld [vmem:[%s7 + $0x30] sm:$0xf]
  %v280 = vld [vmem:[%s7 + $0x34] sm:$0xf]
  %v281 = vld [vmem:[%s7 + $0x38] sm:$0xf]
  %v282 = vld [vmem:[%s7 + $0x3c] sm:$0xf]
  %v285 = vunpack.c.l.b16 %v265
  %v286 = vunpack.c.l.b16 %v266
  %v287 = vpack.c.b16 %v286, %v285
  %v305 = vunpack.c.l.b16 %v267
  %v306 = vunpack.c.l.b16 %v268
  %v307 = vunpack.c.l.b16 %v269
  %v308 = vunpack.c.l.b16 %v270
  %v309 = vunpack.c.l.b16 %v271
  %v310 = vunpack.c.l.b16 %v272
  %v311 = vunpack.c.l.b16 %v273
  %v312 = vunpack.c.l.b16 %v274
  %v313 = vunpack.c.l.b16 %v275
  %v314 = vunpack.c.l.b16 %v276
  %v315 = vunpack.c.l.b16 %v277
  %v316 = vunpack.c.l.b16 %v278
  %v317 = vunpack.c.l.b16 %v279
  %v318 = vunpack.c.l.b16 %v280
  %v319 = vunpack.c.l.b16 %v281
  %v320 = vunpack.c.l.b16 %v282
  %v321 = vpack.c.b16 %v306, %v305
  %v322 = vpack.c.b16 %v308, %v307
  %v323 = vpack.c.b16 %v310, %v309
  %v324 = vpack.c.b16 %v312, %v311
  %v325 = vpack.c.b16 %v314, %v313
  %v326 = vpack.c.b16 %v316, %v315
  %v327 = vpack.c.b16 %v318, %v317
  %v328 = vpack.c.b16 %v320, %v319
  %337 = vmatprep.subr.bf16.mxu0 0
  %338 = vmatpush1.bf16.msra.mxu0 %v328
  %339 = vmatprep.subr.bf16.mxu0 0
  %340 = vmatpush1.bf16.msra.mxu0 %v327
  %341 = vmatprep.subr.bf16.mxu0 0
  %342 = vmatpush1.bf16.msra.mxu0 %v326
  %343 = vmatprep.subr.bf16.mxu0 0
  %344 = vmatpush1.bf16.msra.mxu0 %v325
  %345 = vmatprep.subr.bf16.mxu0 0
  %346 = vmatpush1.bf16.msra.mxu0 %v324
  %347 = vmatprep.subr.bf16.mxu0 0
  %348 = vmatpush1.bf16.msra.mxu0 %v323
  %349 = vmatprep.subr.bf16.mxu0 0
  %350 = vmatpush1.bf16.msra.mxu0 %v322
  %351 = vmatprep.subr.bf16.mxu0 0
  %352 = vmatpush1.bf16.msra.mxu0 %v321
  %353 = vmatprep.subr.bf16.mxu0 0
  %354 = vmatpush2.bf16.msra.mxu0 0
  %355 = vmatprep.subr.bf16.mxu0 0
  %356 = vmatpush2.bf16.msra.mxu0 0
  %357 = vmatprep.subr.bf16.mxu0 0
  %358 = vmatpush2.bf16.msra.mxu0 0
  %359 = vmatprep.subr.bf16.mxu0 0
  %360 = vmatpush2.bf16.msra.mxu0 0
  %361 = vmatprep.subr.bf16.mxu0 0
  %362 = vmatpush2.bf16.msra.mxu0 0
  %363 = vmatprep.subr.bf16.mxu0 0
  %364 = vmatpush2.bf16.msra.mxu0 0
  %365 = vmatprep.subr.bf16.mxu0 0
  %366 = vmatpush2.bf16.msra.mxu0 0
  %367 = vmatprep.subr.bf16.mxu0 0
  %368 = vmatpush2.bf16.msra.mxu0 0
  %369 = vmatprep.mubr.bf16.mxu0 0
  %370 = vmatmul.mubr.bf16.gmra.mxu0 %v287
  %v371 = vpop.f32.mrf.mxu0
  %v372 = vadd.f32 0.0, %v371
  %v373 = vpop.f32.mrf.mxu0
  %v374 = vpop.f32.mrf.mxu0
  %v375 = vadd.f32 0.0, %v374
  %v376 = vpop.f32.mrf.mxu0
  %377 = vdwg.mxu0
  %v378 = vadd.f32 %v259, %v372
  %v379 = vadd.f32 %v262, %v375
  %v380 = vld [vmem:[%s3] sm:$0xf]
  %v381 = vld [vmem:[%s3 + $0x4] sm:$0xf]
  %v382 = vld [vmem:[%s8] sm:$0xf]
  %v383 = vld [vmem:[%s8 + $0x4] sm:$0xf]
  %v384 = vld [vmem:[%s8 + $0x8] sm:$0xf]
  %v385 = vld [vmem:[%s8 + $0xc] sm:$0xf]
  %v386 = vld [vmem:[%s8 + $0x10] sm:$0xf]
  %v387 = vld [vmem:[%s8 + $0x14] sm:$0xf]
  %v388 = vld [vmem:[%s8 + $0x18] sm:$0xf]
  %v389 = vld [vmem:[%s8 + $0x1c] sm:$0xf]
  %v390 = vld [vmem:[%s8 + $0x20] sm:$0xf]
  %v391 = vld [vmem:[%s8 + $0x24] sm:$0xf]
  %v392 = vld [vmem:[%s8 + $0x28] sm:$0xf]
  %v393 = vld [vmem:[%s8 + $0x2c] sm:$0xf]
  %v394 = vld [vmem:[%s8 + $0x30] sm:$0xf]
  %v395 = vld [vmem:[%s8 + $0x34] sm:$0xf]
  %v396 = vld [vmem:[%s8 + $0x38] sm:$0xf]
  %v397 = vld [vmem:[%s8 + $0x3c] sm:$0xf]
  %v400 = vunpack.c.l.b16 %v380
  %v401 = vunpack.c.l.b16 %v381
  %v402 = vpack.c.b16 %v401, %v400
  %v420 = vunpack.c.l.b16 %v382
  %v421 = vunpack.c.l.b16 %v383
  %v422 = vunpack.c.l.b16 %v384
  %v423 = vunpack.c.l.b16 %v385
  %v424 = vunpack.c.l.b16 %v386
  %v425 = vunpack.c.l.b16 %v387
  %v426 = vunpack.c.l.b16 %v388
  %v427 = vunpack.c.l.b16 %v389
  %v428 = vunpack.c.l.b16 %v390
  %v429 = vunpack.c.l.b16 %v391
  %v430 = vunpack.c.l.b16 %v392
  %v431 = vunpack.c.l.b16 %v393
  %v432 = vunpack.c.l.b16 %v394
  %v433 = vunpack.c.l.b16 %v395
  %v434 = vunpack.c.l.b16 %v396
  %v435 = vunpack.c.l.b16 %v397
  %v436 = vpack.c.b16 %v421, %v420
  %v437 = vpack.c.b16 %v423, %v422
  %v438 = vpack.c.b16 %v425, %v424
  %v439 = vpack.c.b16 %v427, %v426
  %v440 = vpack.c.b16 %v429, %v428
  %v441 = vpack.c.b16 %v431, %v430
  %v442 = vpack.c.b16 %v433, %v432
  %v443 = vpack.c.b16 %v435, %v434
  %452 = vmatprep.subr.bf16.mxu0 0
  %453 = vmatpush1.bf16.msra.mxu0 %v443
  %454 = vmatprep.subr.bf16.mxu0 0
  %455 = vmatpush1.bf16.msra.mxu0 %v442
  %456 = vmatprep.subr.bf16.mxu0 0
  %457 = vmatpush1.bf16.msra.mxu0 %v441
  %458 = vmatprep.subr.bf16.mxu0 0
  %459 = vmatpush1.bf16.msra.mxu0 %v440
  %460 = vmatprep.subr.bf16.mxu0 0
  %461 = vmatpush1.bf16.msra.mxu0 %v439
  %462 = vmatprep.subr.bf16.mxu0 0
  %463 = vmatpush1.bf16.msra.mxu0 %v438
  %464 = vmatprep.subr.bf16.mxu0 0
  %465 = vmatpush1.bf16.msra.mxu0 %v437
  %466 = vmatprep.subr.bf16.mxu0 0
  %467 = vmatpush1.bf16.msra.mxu0 %v436
  %468 = vmatprep.subr.bf16.mxu0 0
  %469 = vmatpush2.bf16.msra.mxu0 0
  %470 = vmatprep.subr.bf16.mxu0 0
  %471 = vmatpush2.bf16.msra.mxu0 0
  %472 = vmatprep.subr.bf16.mxu0 0
  %473 = vmatpush2.bf16.msra.mxu0 0
  %474 = vmatprep.subr.bf16.mxu0 0
  %475 = vmatpush2.bf16.msra.mxu0 0
  %476 = vmatprep.subr.bf16.mxu0 0
  %477 = vmatpush2.bf16.msra.mxu0 0
  %478 = vmatprep.subr.bf16.mxu0 0
  %479 = vmatpush2.bf16.msra.mxu0 0
  %480 = vmatprep.subr.bf16.mxu0 0
  %481 = vmatpush2.bf16.msra.mxu0 0
  %482 = vmatprep.subr.bf16.mxu0 0
  %483 = vmatpush2.bf16.msra.mxu0 0
  %484 = vmatprep.mubr.bf16.mxu0 0
  %485 = vmatmul.mubr.bf16.gmra.mxu0 %v402
  %v486 = vpop.f32.mrf.mxu0
  %v487 = vadd.f32 0.0, %v486
  %v488 = vpop.f32.mrf.mxu0
  %v489 = vpop.f32.mrf.mxu0
  %v490 = vadd.f32 0.0, %v489
  %v491 = vpop.f32.mrf.mxu0
  %492 = vdwg.mxu0
  %v493 = vadd.f32 %v378, %v487
  %v494 = vadd.f32 %v379, %v490
  %v495 = vld [vmem:[%s4] sm:$0xf]
  %v496 = vld [vmem:[%s4 + $0x4] sm:$0xf]
  %v497 = vld [vmem:[%s9] sm:$0xf]
  %v498 = vld [vmem:[%s9 + $0x4] sm:$0xf]
  %v499 = vld [vmem:[%s9 + $0x8] sm:$0xf]
  %v500 = vld [vmem:[%s9 + $0xc] sm:$0xf]
  %v501 = vld [vmem:[%s9 + $0x10] sm:$0xf]
  %v502 = vld [vmem:[%s9 + $0x14] sm:$0xf]
  %v503 = vld [vmem:[%s9 + $0x18] sm:$0xf]
  %v504 = vld [vmem:[%s9 + $0x1c] sm:$0xf]
  %v505 = vld [vmem:[%s9 + $0x20] sm:$0xf]
  %v506 = vld [vmem:[%s9 + $0x24] sm:$0xf]
  %v507 = vld [vmem:[%s9 + $0x28] sm:$0xf]
  %v508 = vld [vmem:[%s9 + $0x2c] sm:$0xf]
  %v509 = vld [vmem:[%s9 + $0x30] sm:$0xf]
  %v510 = vld [vmem:[%s9 + $0x34] sm:$0xf]
  %v511 = vld [vmem:[%s9 + $0x38] sm:$0xf]
  %v512 = vld [vmem:[%s9 + $0x3c] sm:$0xf]
  %v515 = vunpack.c.l.b16 %v495
  %v516 = vunpack.c.l.b16 %v496
  %v517 = vpack.c.b16 %v516, %v515
  %v535 = vunpack.c.l.b16 %v497
  %v536 = vunpack.c.l.b16 %v498
  %v537 = vunpack.c.l.b16 %v499
  %v538 = vunpack.c.l.b16 %v500
  %v539 = vunpack.c.l.b16 %v501
  %v540 = vunpack.c.l.b16 %v502
  %v541 = vunpack.c.l.b16 %v503
  %v542 = vunpack.c.l.b16 %v504
  %v543 = vunpack.c.l.b16 %v505
  %v544 = vunpack.c.l.b16 %v506
  %v545 = vunpack.c.l.b16 %v507
  %v546 = vunpack.c.l.b16 %v508
  %v547 = vunpack.c.l.b16 %v509
  %v548 = vunpack.c.l.b16 %v510
  %v549 = vunpack.c.l.b16 %v511
  %v550 = vunpack.c.l.b16 %v512
  %v551 = vpack.c.b16 %v536, %v535
  %v552 = vpack.c.b16 %v538, %v537
  %v553 = vpack.c.b16 %v540, %v539
  %v554 = vpack.c.b16 %v542, %v541
  %v555 = vpack.c.b16 %v544, %v543
  %v556 = vpack.c.b16 %v546, %v545
  %v557 = vpack.c.b16 %v548, %v547
  %v558 = vpack.c.b16 %v550, %v549
  %567 = vmatprep.subr.bf16.mxu0 0
  %568 = vmatpush1.bf16.msra.mxu0 %v558
  %569 = vmatprep.subr.bf16.mxu0 0
  %570 = vmatpush1.bf16.msra.mxu0 %v557
  %571 = vmatprep.subr.bf16.mxu0 0
  %572 = vmatpush1.bf16.msra.mxu0 %v556
  %573 = vmatprep.subr.bf16.mxu0 0
  %574 = vmatpush1.bf16.msra.mxu0 %v555
  %575 = vmatprep.subr.bf16.mxu0 0
  %576 = vmatpush1.bf16.msra.mxu0 %v554
  %577 = vmatprep.subr.bf16.mxu0 0
  %578 = vmatpush1.bf16.msra.mxu0 %v553
  %579 = vmatprep.subr.bf16.mxu0 0
  %580 = vmatpush1.bf16.msra.mxu0 %v552
  %581 = vmatprep.subr.bf16.mxu0 0
  %582 = vmatpush1.bf16.msra.mxu0 %v551
  %583 = vmatprep.subr.bf16.mxu0 0
  %584 = vmatpush2.bf16.msra.mxu0 0
  %585 = vmatprep.subr.bf16.mxu0 0
  %586 = vmatpush2.bf16.msra.mxu0 0
  %587 = vmatprep.subr.bf16.mxu0 0
  %588 = vmatpush2.bf16.msra.mxu0 0
  %589 = vmatprep.subr.bf16.mxu0 0
  %590 = vmatpush2.bf16.msra.mxu0 0
  %591 = vmatprep.subr.bf16.mxu0 0
  %592 = vmatpush2.bf16.msra.mxu0 0
  %593 = vmatprep.subr.bf16.mxu0 0
  %594 = vmatpush2.bf16.msra.mxu0 0
  %595 = vmatprep.subr.bf16.mxu0 0
  %596 = vmatpush2.bf16.msra.mxu0 0
  %597 = vmatprep.subr.bf16.mxu0 0
  %598 = vmatpush2.bf16.msra.mxu0 0
  %599 = vmatprep.mubr.bf16.mxu0 0
  %600 = vmatmul.mubr.bf16.gmra.mxu0 %v517
  %v601 = vpop.f32.mrf.mxu0
  %v602 = vadd.f32 0.0, %v601
  %v603 = vpop.f32.mrf.mxu0
  %v604 = vpop.f32.mrf.mxu0
  %v605 = vadd.f32 0.0, %v604
  %v606 = vpop.f32.mrf.mxu0
  %607 = vdwg.mxu0
  %v608 = vadd.f32 %v493, %v602
  %v609 = vadd.f32 %v494, %v605
  %v610 = vld [vmem:[%s10] sm:$0x1]
  %v612 = vlaneseq
  %v613 = vshrl.u32 %v612, 7
  %v614 = vsub.s32 0, %v613
  %v615 = vrot.slane %v610, %v614
  %v617 = vadd.f32 %v608, %v615
  %v618 = vadd.f32 %v609, %v615
  %619 = vst [vmem:[%s11] sm:$0xff] %v617
  %620 = vst [vmem:[%s11 + $0x8] sm:$0xff] %v618
  // Predicated region
  $region46: #{generator_forward.7} parent=0 // pred_check
    _
  $region47: #{generator_forward.7} parent=0 // pred_check_branch
    %622 = sbr.rel (0) target = $region49
  $region48: #{generator_forward.7} parent=0 // pred_region
    _
  $region49: #{generator_forward.7} parent=0 // pred_fallthru
    _
  // Predicated region
  $region50: #{generator_forward.7} parent=0 // pred_check
    _
  $region51: #{generator_forward.7} parent=0 // pred_check_branch
    %624 = sbr.rel (0) target = $region53
  $region52: #{generator_forward.7} parent=0 // pred_region
    _
  $region53: #{generator_forward.7} parent=0 // pred_fallthru
    _

</llo_original>
